<compile_context>
chip_gen: v7x
topology: tpu7x:2x2x1
jax: 0.10.0
libtpu: 0.0.40
codegen_flags: <defaults>
</compile_context>

<pallas_src>
import functools
import math

import jax
import jax.numpy as jnp
from jax.experimental import pallas as pl
from jax.experimental.pallas import tpu as pltpu

_EPS = 1e-12          # matches torch F.normalize(eps=1e-12)
_TM = 128             # batch tile (sublane aligned, fine on v5e/v6e/v7x)
_TN = 512             # out_features tile (lane-dense multiple of 128)
_TK_MAX = 512         # max contraction tile


def _round_up(x: int, m: int) -> int:
    return ((x + m - 1) // m) * m


def _pad2d(a, rows, cols, dtype):
    r, c = a.shape
    a = a.astype(dtype)
    if r == rows and c == cols:
        return a
    return jnp.zeros((rows, cols), dtype).at[:r, :c].set(a)


# --------------------------- row 1/||.|| pre-pass ---------------------------

def _row_inv_norm_kernel(x_ref, o_ref):
    x = x_ref[...].astype(jnp.float32)
    ss = jnp.sum(x * x, axis=-1, keepdims=True)
    # 1/max(||x||, eps) == rsqrt(max(sum_sq, eps^2)); rsqrt runs on the EUP.
    o_ref[...] = jax.lax.rsqrt(jnp.maximum(ss, _EPS * _EPS))


def _row_inv_norms(x_pad):
    rows, d_pad = x_pad.shape
    # Row tile dividing the (multiple-of-128) padded row count; keep the
    # double-buffered f32 input tile under ~8 MiB.
    tr = 128
    while tr > 8 and 2 * tr * d_pad * 4 > (8 << 20):
        tr //= 2
    return pl.pallas_call(
        _row_inv_norm_kernel,
        out_shape=jax.ShapeDtypeStruct((rows, 1), jnp.float32),
        grid_spec=pltpu.PrefetchScalarGridSpec(
            num_scalar_prefetch=0,
            grid=(rows // tr,),
            in_specs=[pl.BlockSpec((tr, d_pad), lambda i: (i, 0))],
            out_specs=pl.BlockSpec((tr, 1), lambda i: (i, 0)),
        ),
        compiler_params=pltpu.CompilerParams(
            dimension_semantics=("parallel",)),
        cost_estimate=pl.CostEstimate(
            flops=2 * rows * d_pad,
            transcendentals=rows,
            bytes_accessed=rows * d_pad * 4 + rows * 4),
    )(x_pad)


# ------------------------------ cosine matmul -------------------------------

def _cosine_kernel(x_ref, w_ref, ix_ref, iw_ref, o_ref, acc_ref):
    k = pl.program_id(2)

    @pl.when(k == 0)
    def _():
        acc_ref[...] = jnp.zeros_like(acc_ref)

    # x_tile (tm, tk) @ w_tile (tn, tk).T  ->  (tm, tn), f32 accumulation.
    acc_ref[...] += jax.lax.dot_general(
        x_ref[...], w_ref[...],
        dimension_numbers=(((1,), (1,)), ((), ())),
        preferred_element_type=jnp.float32,
    )

    @pl.when(k == pl.num_programs(2) - 1)
    def _():
        # cosine[m, n] = acc[m, n] * (1/||x_m||) * (1/||w_n||) as a post-matmul
        # scale: (tm,1) broadcasts over lanes, (1,tn) over sublanes.
        o_ref[...] = (acc_ref[...] * ix_ref[...] * iw_ref[...]).astype(o_ref.dtype)


@functools.partial(jax.jit, static_argnames=("use_bf16",))
def arc_margin_product(features, weight, *, use_bf16: bool = True):
    """cosine = normalize(features) @ normalize(weight).T via Pallas TPU kernels."""
    b, d = features.shape
    o, d2 = weight.shape
    assert d == d2, "in_features mismatch"

    # Padded, tile-aligned shapes (D on the lane dim, multiple of 128).
    d_pad = _round_up(d, 128)
    tk = next(c for c in (_TK_MAX, 384, 256, 128) if d_pad % c == 0)
    b_pad = _round_up(b, _TM)
    o_pad = _round_up(o, _TN)

    x32 = _pad2d(features, b_pad, d_pad, jnp.float32)
    w32 = _pad2d(weight, o_pad, d_pad, jnp.float32)

    # Hoisted normalization pre-pass (f32, exact PyTorch eps semantics).
    inv_x = _row_inv_norms(x32)                     # (b_pad, 1)
    inv_w = _row_inv_norms(w32).reshape(1, o_pad)   # (1, o_pad), lane-major

    # MXU operands: bf16 feed by default (f32 accumulation inside the kernel).
    op_dtype = jnp.bfloat16 if use_bf16 else jnp.float32
    x_op = x32.astype(op_dtype)
    w_op = w32.astype(op_dtype)
    op_size = 2 if use_bf16 else 4

    grid = (b_pad // _TM, o_pad // _TN, d_pad // tk)

    # Double-buffered x/w/out tiles + f32 accumulator + scale vectors.
    tile_vmem = (2 * (_TM * tk * op_size + _TN * tk * op_size
                      + _TM * _TN * 4 + _TM * 4 + _TN * 4)
                 + _TM * _TN * 4)
    vmem_limit = int(min(max(4 * tile_vmem, 16 << 20), 32 << 20))

    cosine = pl.pallas_call(
        _cosine_kernel,
        out_shape=jax.ShapeDtypeStruct((b_pad, o_pad), jnp.float32),
        grid_spec=pltpu.PrefetchScalarGridSpec(
            num_scalar_prefetch=0,
            grid=grid,
            in_specs=[
                pl.BlockSpec((_TM, tk), lambda i, j, k: (i, k)),   # x tile
                pl.BlockSpec((_TN, tk), lambda i, j, k: (j, k)),   # w tile
                pl.BlockSpec((_TM, 1), lambda i, j, k: (i, 0)),    # 1/||x||
                pl.BlockSpec((1, _TN), lambda i, j, k: (0, j)),    # 1/||w||
            ],
            out_specs=pl.BlockSpec((_TM, _TN), lambda i, j, k: (i, j)),
            scratch_shapes=[pltpu.VMEM((_TM, _TN), jnp.float32)],
        ),
        compiler_params=pltpu.CompilerParams(
            dimension_semantics=("parallel", "parallel", "arbitrary"),
            vmem_limit_bytes=vmem_limit),
        cost_estimate=pl.CostEstimate(
            flops=2 * b_pad * o_pad * d_pad,
            transcendentals=0,
            bytes_accessed=(b_pad * d_pad + o_pad * d_pad) * op_size
                           + b_pad * o_pad * 4 + (b_pad + o_pad) * 4),
    )(x_op, w_op, inv_x, inv_w)

    return cosine[:b, :o]


# ------------------------------ test utilities ------------------------------

def init_weight(key, out_features: int, in_features: int) -> jax.Array:
    # Xavier/Glorot uniform, matching nn.init.xavier_uniform_ for a
    # (out_features, in_features) weight: bound = sqrt(6/(fan_in+fan_out)).
    bound = math.sqrt(6.0 / (in_features + out_features))
    return jax.random.uniform(key, (out_features, in_features),
                              dtype=jnp.float32, minval=-bound, maxval=bound)


def _reference(features, weight):
    xn = features / jnp.maximum(
        jnp.linalg.norm(features, axis=-1, keepdims=True), _EPS)
    wn = weight / jnp.maximum(
        jnp.linalg.norm(weight, axis=-1, keepdims=True), _EPS)
    return xn @ wn.T


if __name__ == "__main__":
    key = jax.random.PRNGKey(0)
    k_x, k_w, k_x2, k_w2 = jax.random.split(key, 4)

    # Small shapes consistent with the module's forward.
    batch, in_features, out_features = 8, 32, 16
    features = jax.random.normal(k_x, (batch, in_features), dtype=jnp.float32)
    weight = init_weight(k_w, out_features, in_features)
    ref = _reference(features, weight)

    # f32 MXU operands: tight match to the PyTorch reference.
    cos_f32 = jax.block_until_ready(
        arc_margin_product(features, weight, use_bf16=False))
    assert cos_f32.shape == (batch, out_features)
    assert jnp.allclose(cos_f32, ref, atol=1e-5, rtol=1e-5), "f32 mismatch"

    # Default fast path: bf16 MXU operands, f32 accumulation (~1e-3 error budget).
    cos_bf16 = jax.block_until_ready(arc_margin_product(features, weight))
    assert cos_bf16.shape == (batch, out_features)
    assert jnp.allclose(cos_bf16, ref, atol=1.5e-2, rtol=0.0), "bf16 mismatch"

    # A slightly larger case exercising multiple output tiles and padding slices.
    b2, d2_, o2 = 24, 96, 800
    f2 = jax.random.normal(k_x2, (b2, d2_), dtype=jnp.float32)
    w2 = init_weight(k_w2, o2, d2_)
    cos2 = jax.block_until_ready(arc_margin_product(f2, w2, use_bf16=False))
    assert cos2.shape == (b2, o2)
    assert jnp.allclose(cos2, _reference(f2, w2), atol=1e-5, rtol=1e-5), \
        "multi-tile mismatch"

    print("KERNEL_OK")
</pallas_src>

<mosaic_0001>
module attributes {stable_mosaic.version = 11 : i64} {
  func.func @_row_inv_norm_kernel(%arg0: i32, %arg1: memref<128x128xf32, #tpu.memory_space<vmem>>, %arg2: memref<128x1xf32, #tpu.memory_space<vmem>>) attributes {dimension_semantics = [#tpu.dimension_semantics<parallel>], iteration_bounds = array<i64: 4>, scalar_prefetch = 0 : i64, scratch_operands = 0 : i64, tpu.core_type = #tpu.core_type<tc>, window_params = [{transform_indices = @transform_0, window_bounds = array<i64: 128, 128>}, {transform_indices = @transform_1, window_bounds = array<i64: 128, 1>}]} {
    %c0 = arith.constant 0 : index
    %c0_0 = arith.constant 0 : index
    %0 = vector.load %arg1[%c0, %c0_0] : memref<128x128xf32, #tpu.memory_space<vmem>>, vector<128x128xf32>
    %1 = arith.mulf %0, %0 : vector<128x128xf32>
    %cst = arith.constant dense<0.000000e+00> : vector<128xf32>
    %2 = vector.multi_reduction <add>, %1, %cst [1] : vector<128x128xf32> to vector<128xf32>
    %3 = vector.shape_cast %2 : vector<128xf32> to vector<128x1xf32>
    %cst_1 = arith.constant 1.000000e-24 : f32
    %4 = vector.broadcast %cst_1 : f32 to vector<128x1xf32>
    %5 = arith.maximumf %3, %4 : vector<128x1xf32>
    %6 = math.rsqrt %5 : vector<128x1xf32>
    %c0_2 = arith.constant 0 : index
    %c0_3 = arith.constant 0 : index
    %7 = vector.load %arg2[%c0_2, %c0_3] : memref<128x1xf32, #tpu.memory_space<vmem>>, vector<128x1xf32>
    tpu.vector_store %arg2[%c0_2, %c0_3], %6 {strides = array<i32>} : memref<128x1xf32, #tpu.memory_space<vmem>>, vector<128x1xf32>,
    return
  }
  func.func @transform_0(%arg0: i32) -> (i32, i32) {
    %c0_i32 = arith.constant 0 : i32
    %c0_i32_0 = arith.constant 0 : i32
    return %arg0, %c0_i32 : i32, i32
  }
  func.func @transform_1(%arg0: i32) -> (i32, i32) {
    %c0_i32 = arith.constant 0 : i32
    %c0_i32_0 = arith.constant 0 : i32
    return %arg0, %c0_i32 : i32, i32
  }
}

module attributes {stable_mosaic.version = 11 : i64} {
  func.func @_row_inv_norm_kernel(%arg0: i32, %arg1: memref<128x128xf32, #tpu.memory_space<vmem>>, %arg2: memref<128x1xf32, #tpu.memory_space<vmem>>) attributes {dimension_semantics = [#tpu.dimension_semantics<parallel>], iteration_bounds = array<i64: 1>, scalar_prefetch = 0 : i64, scratch_operands = 0 : i64, tpu.core_type = #tpu.core_type<tc>, window_params = [{transform_indices = @transform_0, window_bounds = array<i64: 128, 128>}, {transform_indices = @transform_1, window_bounds = array<i64: 128, 1>}]} {
    %c0 = arith.constant 0 : index
    %c0_0 = arith.constant 0 : index
    %0 = vector.load %arg1[%c0, %c0_0] : memref<128x128xf32, #tpu.memory_space<vmem>>, vector<128x128xf32>
    %1 = arith.mulf %0, %0 : vector<128x128xf32>
    %cst = arith.constant dense<0.000000e+00> : vector<128xf32>
    %2 = vector.multi_reduction <add>, %1, %cst [1] : vector<128x128xf32> to vector<128xf32>
    %3 = vector.shape_cast %2 : vector<128xf32> to vector<128x1xf32>
    %cst_1 = arith.constant 1.000000e-24 : f32
    %4 = vector.broadcast %cst_1 : f32 to vector<128x1xf32>
    %5 = arith.maximumf %3, %4 : vector<128x1xf32>
    %6 = math.rsqrt %5 : vector<128x1xf32>
    %c0_2 = arith.constant 0 : index
    %c0_3 = arith.constant 0 : index
    %7 = vector.load %arg2[%c0_2, %c0_3] : memref<128x1xf32, #tpu.memory_space<vmem>>, vector<128x1xf32>
    tpu.vector_store %arg2[%c0_2, %c0_3], %6 {strides = array<i32>} : memref<128x1xf32, #tpu.memory_space<vmem>>, vector<128x1xf32>,
    return
  }
  func.func @transform_0(%arg0: i32) -> (i32, i32) {
    %c0_i32 = arith.constant 0 : i32
    %c0_i32_0 = arith.constant 0 : i32
    return %arg0, %c0_i32 : i32, i32
  }
  func.func @transform_1(%arg0: i32) -> (i32, i32) {
    %c0_i32 = arith.constant 0 : i32
    %c0_i32_0 = arith.constant 0 : i32
    return %arg0, %c0_i32 : i32, i32
  }
}

module attributes {stable_mosaic.version = 11 : i64} {
  func.func @_cosine_kernel(%arg0: i32, %arg1: i32, %arg2: i32, %arg3: memref<128x128xf32, #tpu.memory_space<vmem>>, %arg4: memref<512x128xf32, #tpu.memory_space<vmem>>, %arg5: memref<128x1xf32, #tpu.memory_space<vmem>>, %arg6: memref<1x512xf32, #tpu.memory_space<vmem>>, %arg7: memref<128x512xf32, #tpu.memory_space<vmem>>, %arg8: memref<128x512xf32, #tpu.memory_space<vmem>>) attributes {dimension_semantics = [#tpu.dimension_semantics<parallel>, #tpu.dimension_semantics<parallel>, #tpu.dimension_semantics<arbitrary>], iteration_bounds = array<i64: 1, 1, 1>, scalar_prefetch = 0 : i64, scratch_operands = 1 : i64, tpu.core_type = #tpu.core_type<tc>, window_params = [{transform_indices = @transform_0, window_bounds = array<i64: 128, 128>}, {transform_indices = @transform_1, window_bounds = array<i64: 512, 128>}, {transform_indices = @transform_2, window_bounds = array<i64: 128, 1>}, {transform_indices = @transform_3, window_bounds = array<i64: 1, 512>}, {transform_indices = @transform_4, window_bounds = array<i64: 128, 512>}]} {
    %c0_i32 = arith.constant 0 : i32
    %0 = arith.cmpi eq, %arg2, %c0_i32 : i32
    %1 = arith.extui %0 : i1 to i32
    %c0_i32_0 = arith.constant 0 : i32
    %2 = arith.cmpi ne, %1, %c0_i32_0 : i32
    scf.if %2 {
      %cst_10 = arith.constant 0.000000e+00 : f32
      %12 = vector.broadcast %cst_10 : f32 to vector<128x512xf32>
      %c0_11 = arith.constant 0 : index
      %c0_12 = arith.constant 0 : index
      %13 = vector.load %arg8[%c0_11, %c0_12] : memref<128x512xf32, #tpu.memory_space<vmem>>, vector<128x512xf32>
      tpu.vector_store %arg8[%c0_11, %c0_12], %12 {strides = array<i32>} : memref<128x512xf32, #tpu.memory_space<vmem>>, vector<128x512xf32>,
    } else {
    }
    %c0 = arith.constant 0 : index
    %c0_1 = arith.constant 0 : index
    %3 = vector.load %arg8[%c0, %c0_1] : memref<128x512xf32, #tpu.memory_space<vmem>>, vector<128x512xf32>
    %c0_2 = arith.constant 0 : index
    %c0_3 = arith.constant 0 : index
    %4 = vector.load %arg3[%c0_2, %c0_3] : memref<128x128xf32, #tpu.memory_space<vmem>>, vector<128x128xf32>
    %c0_4 = arith.constant 0 : index
    %c0_5 = arith.constant 0 : index
    %5 = vector.load %arg4[%c0_4, %c0_5] : memref<512x128xf32, #tpu.memory_space<vmem>>, vector<512x128xf32>
    %cst = arith.constant dense<0.000000e+00> : vector<128x512xf32>
    %6 = tpu.matmul %4, %5, %cst {dimension_numbers = #tpu.dot_dimension_numbers<[1], [1], [0], [0], [0, 0, 1, 0], [], []>} : vector<128x128xf32>, vector<512x128xf32>, vector<128x512xf32> -> vector<128x512xf32>
    %7 = arith.addf %3, %6 : vector<128x512xf32>
    %c0_6 = arith.constant 0 : index
    %c0_7 = arith.constant 0 : index
    %8 = vector.load %arg8[%c0_6, %c0_7] : memref<128x512xf32, #tpu.memory_space<vmem>>, vector<128x512xf32>
    tpu.vector_store %arg8[%c0_6, %c0_7], %7 {strides = array<i32>} : memref<128x512xf32, #tpu.memory_space<vmem>>, vector<128x512xf32>,
    %c0_i32_8 = arith.constant 0 : i32
    %9 = arith.cmpi eq, %arg2, %c0_i32_8 : i32
    %10 = arith.extui %9 : i1 to i32
    %c0_i32_9 = arith.constant 0 : i32
    %11 = arith.cmpi ne, %10, %c0_i32_9 : i32
    scf.if %11 {
      %c0_10 = arith.constant 0 : index
      %c0_11 = arith.constant 0 : index
      %12 = vector.load %arg8[%c0_10, %c0_11] : memref<128x512xf32, #tpu.memory_space<vmem>>, vector<128x512xf32>
      %c0_12 = arith.constant 0 : index
      %c0_13 = arith.constant 0 : index
      %13 = vector.load %arg5[%c0_12, %c0_13] : memref<128x1xf32, #tpu.memory_space<vmem>>, vector<128x1xf32>
      %14 = vector.broadcast %13 : vector<128x1xf32> to vector<128x512xf32>
      %15 = arith.mulf %12, %14 : vector<128x512xf32>
      %c0_14 = arith.constant 0 : index
      %c0_15 = arith.constant 0 : index
      %16 = vector.load %arg6[%c0_14, %c0_15] : memref<1x512xf32, #tpu.memory_space<vmem>>, vector<1x512xf32>
      %17 = vector.broadcast %16 : vector<1x512xf32> to vector<128x512xf32>
      %18 = arith.mulf %15, %17 : vector<128x512xf32>
      %c0_16 = arith.constant 0 : index
      %c0_17 = arith.constant 0 : index
      %19 = vector.load %arg7[%c0_16, %c0_17] : memref<128x512xf32, #tpu.memory_space<vmem>>, vector<128x512xf32>
      tpu.vector_store %arg7[%c0_16, %c0_17], %18 {strides = array<i32>} : memref<128x512xf32, #tpu.memory_space<vmem>>, vector<128x512xf32>,
    } else {
    }
    return
  }
  func.func @transform_0(%arg0: i32, %arg1: i32, %arg2: i32) -> (i32, i32) {
    %c0_i32 = arith.constant 0 : i32
    return %arg0, %arg2 : i32, i32
  }
  func.func @transform_1(%arg0: i32, %arg1: i32, %arg2: i32) -> (i32, i32) {
    %c0_i32 = arith.constant 0 : i32
    return %arg1, %arg2 : i32, i32
  }
  func.func @transform_2(%arg0: i32, %arg1: i32, %arg2: i32) -> (i32, i32) {
    %c0_i32 = arith.constant 0 : i32
    %c0_i32_0 = arith.constant 0 : i32
    return %arg0, %c0_i32 : i32, i32
  }
  func.func @transform_3(%arg0: i32, %arg1: i32, %arg2: i32) -> (i32, i32) {
    %c0_i32 = arith.constant 0 : i32
    %c0_i32_0 = arith.constant 0 : i32
    return %c0_i32, %arg1 : i32, i32
  }
  func.func @transform_4(%arg0: i32, %arg1: i32, %arg2: i32) -> (i32, i32) {
    %c0_i32 = arith.constant 0 : i32
    return %arg0, %arg1 : i32, i32
  }
}

</mosaic_0001>

<llo_original>
// kernel: arc_margin_product.4
$region0: #{arc_margin_product.4}
  #allocation0 [shape = 'u32[]', space=smem, size = 0x4, offset = 0x4, fixed_abs, tag = 'smem constant byte address 0x4 - core index']
  #allocation1 [shape = 'u32[144,128]{1,0:T(1,128)}', space=vmem, size = 0x12000, scoped, tag = 'internal scratch']
  %s0 = inlined_call_operand.vmem [shape: f32[512,128], index: 0, kind: input, shape index: {}]
  %s1 = inlined_call_operand.vmem [shape: f32[512,1], index: 1, kind: output, shape index: {}]
  %s2 = sld [smem:[#allocation0]]
  $region37: #{arc_margin_product.4} parent=0
    _
  %s4 = ssub.s32 1, %s2
  %s5 = scalar_select 0, %s4, %s2
  loop: start=0, step=1, limit=6
  $region2: #{arc_margin_product.4} parent=0 // loop_pre_header
    _
  $region3: #{arc_margin_product.4} parent=0 // loop_header
    %s7 = sphi 0, %s11
    %p8 = scmp.ge.s32.totalorder %s7, 6
    %s17 = sphi 0, %s19
    %s20 = sphi 0, %s17
    %s21 = sphi 0, %s20
    %s37 = sphi 0, %s21
    %s43 = sphi 0, %s45
    %s46 = sphi 0, %s43
    %s47 = sphi 0, %s46
    %s63 = sphi 0, %s47
  $region4: #{arc_margin_product.4} parent=0 // loop_header_branch
    %10 = sbr.rel (%p8) target = $region8
  $region5: #{arc_margin_product.4} parent=0 // loop_body
    %s12 = ssub.s32 %s7, 1
    %s13 = ssub.s32 %s7, 2
    %s14 = sadd.s32 %s7, 1
    %s15 = ssub.s32 %s7, %s14
    %p16 = scmp.eq.s32.totalorder %s15, 0
    %s18 = sadd.s32 %s17, 1
    %s19 = scalar_select %p16, %s17, %s18
    %p22 = pneg %p16
    %p23 = scmp.eq.s32.totalorder %s7, 3
    %p24 = por %p22, %p23
    %p25 = scmp.ne.s32.totalorder %s17, %s20
    %p26 = scmp.eq.s32.totalorder %s7, 0
    %p27 = por %p25, %p26
    %p28 = scmp.ne.s32.totalorder %s17, %s20
    %p29 = scmp.eq.s32.totalorder %s12, 3
    %p30 = por %p28, %p29
    %p31 = scmp.ne.s32.totalorder %s20, %s21
    %p32 = scmp.eq.s32.totalorder %s12, 0
    %p33 = por %p31, %p32
    %p34 = scmp.ne.s32.totalorder %s20, %s21
    %p35 = scmp.eq.s32.totalorder %s13, 3
    %p36 = por %p34, %p35
    %p38 = scmp.ne.s32.totalorder %s21, %s37
    %p39 = scmp.eq.s32.totalorder %s13, 0
    %p40 = por %p38, %p39
    %s41 = ssub.s32 %s7, %s14
    %p42 = scmp.eq.s32.totalorder %s41, 0
    %s44 = sadd.s32 %s43, 1
    %s45 = scalar_select %p42, %s43, %s44
    %p48 = pneg %p42
    %p49 = scmp.eq.s32.totalorder %s7, 3
    %p50 = por %p48, %p49
    %p51 = scmp.ne.s32.totalorder %s43, %s46
    %p52 = scmp.eq.s32.totalorder %s7, 0
    %p53 = por %p51, %p52
    %p54 = scmp.ne.s32.totalorder %s43, %s46
    %p55 = scmp.eq.s32.totalorder %s12, 3
    %p56 = por %p54, %p55
    %p57 = scmp.ne.s32.totalorder %s46, %s47
    %p58 = scmp.eq.s32.totalorder %s12, 0
    %p59 = por %p57, %p58
    %p60 = scmp.ne.s32.totalorder %s46, %s47
    %p61 = scmp.eq.s32.totalorder %s13, 3
    %p62 = por %p60, %p61
    %p64 = scmp.ne.s32.totalorder %s47, %s63
    %p65 = scmp.eq.s32.totalorder %s13, 0
    %p66 = por %p64, %p65
    %p67 = scmp.le.s32.totalorder 1, %s7
    %p68 = scmp.lt.s32.totalorder %s7, 5
    %p69 = pnand %p67, %p68
    %p70 = pneg %p69
    // Predicated region
    $region9: #{arc_margin_product.4} parent=5 // pred_check
      _
    $region10: #{arc_margin_product.4} parent=5 // pred_check_branch
      %72 = sbr.rel (%p69) target = $region12
    $region11: #{arc_margin_product.4} parent=5 // pred_region
      %s73 = ssub.s32 %s7, 1
    $region12: #{arc_margin_product.4} parent=5 // pred_fallthru
      _
    %p74 = scmp.lt.s32.totalorder %s7, 4
    // Predicated region
    $region13: #{arc_margin_product.4} parent=5 // pred_check
      %p75 = pneg %p74
    $region14: #{arc_margin_product.4} parent=5 // pred_check_branch
      %77 = sbr.rel (%p75) target = $region16
    $region15: #{arc_margin_product.4} parent=5 // pred_region
      // Predicated region
      $region17: #{arc_margin_product.4} parent=15 // pred_check
        %p78 = pneg %p27
      $region18: #{arc_margin_product.4} parent=15 // pred_check_branch
        %80 = sbr.rel (%p78) target = $region20
      $region19: #{arc_margin_product.4} parent=15 // pred_region
        %s81 = smul.u32 16, %s7
        %p82 = scmp.lt.s32.totalorder %s81, 63
        %s83 = scalar_select %p82, %s81, 63
        %s84 = smul.addr %s83, 8
        %s85 = scalar_lea.vmem %s0, %s84
        %s86 = smul.u32 16, %s7
      $region20: #{arc_margin_product.4} parent=15 // pred_fallthru
        _
    $region16: #{arc_margin_product.4} parent=5 // pred_fallthru
      _
    %p87 = scmp.le.s32.totalorder 1, %s7
    %p88 = scmp.lt.s32.totalorder %s7, 5
    %p89 = pnand %p87, %p88
    %p90 = pneg %p89
    // Predicated region
    $region21: #{arc_margin_product.4} parent=5 // pred_check
      _
    $region22: #{arc_margin_product.4} parent=5 // pred_check_branch
      %92 = sbr.rel (%p89) target = $region24
    $region23: #{arc_margin_product.4} parent=5 // pred_region
      %s93 = ssub.s32 %s7, 1
      %s94 = smul.u32 16, %s12
      %p95 = scmp.lt.s32.totalorder %s94, 63
      %s96 = scalar_select %p95, %s94, 63
      %s97 = smul.addr %s96, 8
      %s98 = scalar_lea.vmem %s0, %s97
      %p99 = pneg %p33
      %p100 = pneg %p30
      %p101 = pneg %p59
      %p102 = pneg %p56
      %s103 = smul.u32 16, %s12
      %p104 = scmp.lt.s32.totalorder %s103, 63
      %s105 = scalar_select %p104, %s103, 63
      %s106 = smul.addr %s105, 8
      %s107 = scalar_lea.vmem %s1, %s106
      %s108 = smul.u32 16, %s12
      %p109 = scmp.lt.s32.totalorder %s108, 63
      %s110 = scalar_select %p109, %s108, 63
      %s111 = smul.addr %s110, 8
      %s112 = scalar_lea.vmem %s0, %s111
      %s113 = smul.u32 16, %s12
      %s114 = smul.u32 16, %s12
      %p115 = scmp.lt.s32.totalorder %s114, 63
      %s116 = scalar_select %p115, %s114, 63
      %s117 = smul.addr %s116, 8
      %s118 = scalar_lea.vmem %s1, %s117
      %s119 = smul.u32 16, %s12
      %v120 = vld [vmem:[%s112] sm:$0xff]
      %v121 = vld [vmem:[%s112 + $0x8] sm:$0xff]
      %v122 = vld [vmem:[%s112 + $0x10] sm:$0xff]
      %v123 = vld [vmem:[%s112 + $0x18] sm:$0xff]
      %v124 = vld [vmem:[%s112 + $0x20] sm:$0xff]
      %v125 = vld [vmem:[%s112 + $0x28] sm:$0xff]
      %v126 = vld [vmem:[%s112 + $0x30] sm:$0xff]
      %v127 = vld [vmem:[%s112 + $0x38] sm:$0xff]
      %v128 = vld [vmem:[%s112 + $0x40] sm:$0xff]
      %v129 = vld [vmem:[%s112 + $0x48] sm:$0xff]
      %v130 = vld [vmem:[%s112 + $0x50] sm:$0xff]
      %v131 = vld [vmem:[%s112 + $0x58] sm:$0xff]
      %v132 = vld [vmem:[%s112 + $0x60] sm:$0xff]
      %v133 = vld [vmem:[%s112 + $0x68] sm:$0xff]
      %v134 = vld [vmem:[%s112 + $0x70] sm:$0xff]
      %v135 = vld [vmem:[%s112 + $0x78] sm:$0xff]
      %v136 = vmul.f32 %v120, %v120
      %v137 = vmul.f32 %v121, %v121
      %v138 = vmul.f32 %v122, %v122
      %v139 = vmul.f32 %v123, %v123
      %v140 = vmul.f32 %v124, %v124
      %v141 = vmul.f32 %v125, %v125
      %v142 = vmul.f32 %v126, %v126
      %v143 = vmul.f32 %v127, %v127
      %v144 = vmul.f32 %v128, %v128
      %v145 = vmul.f32 %v129, %v129
      %v146 = vmul.f32 %v130, %v130
      %v147 = vmul.f32 %v131, %v131
      %v148 = vmul.f32 %v132, %v132
      %v149 = vmul.f32 %v133, %v133
      %v150 = vmul.f32 %v134, %v134
      %v151 = vmul.f32 %v135, %v135
      %152 = vadd.xlane.f32.xlu0 %v136
      %v153 = vpop.xlane.xlu0 %152
      %154 = vadd.xlane.f32.xlu0 %v137
      %v155 = vpop.xlane.xlu0 %154
      %156 = vadd.xlane.f32.xlu0 %v138
      %v157 = vpop.xlane.xlu0 %156
      %158 = vadd.xlane.f32.xlu0 %v139
      %v159 = vpop.xlane.xlu0 %158
      %160 = vadd.xlane.f32.xlu0 %v140
      %v161 = vpop.xlane.xlu0 %160
      %162 = vadd.xlane.f32.xlu0 %v141
      %v163 = vpop.xlane.xlu0 %162
      %164 = vadd.xlane.f32.xlu0 %v142
      %v165 = vpop.xlane.xlu0 %164
      %166 = vadd.xlane.f32.xlu0 %v143
      %v167 = vpop.xlane.xlu0 %166
      %168 = vadd.xlane.f32.xlu0 %v144
      %v169 = vpop.xlane.xlu0 %168
      %170 = vadd.xlane.f32.xlu0 %v145
      %v171 = vpop.xlane.xlu0 %170
      %172 = vadd.xlane.f32.xlu0 %v146
      %v173 = vpop.xlane.xlu0 %172
      %174 = vadd.xlane.f32.xlu0 %v147
      %v175 = vpop.xlane.xlu0 %174
      %176 = vadd.xlane.f32.xlu0 %v148
      %v177 = vpop.xlane.xlu0 %176
      %178 = vadd.xlane.f32.xlu0 %v149
      %v179 = vpop.xlane.xlu0 %178
      %180 = vadd.xlane.f32.xlu0 %v150
      %v181 = vpop.xlane.xlu0 %180
      %182 = vadd.xlane.f32.xlu0 %v151
      %v183 = vpop.xlane.xlu0 %182
      %v184 = vmax.f32 %v153, 1e-24
      %v185 = vmax.f32 %v155, 1e-24
      %v186 = vmax.f32 %v157, 1e-24
      %v187 = vmax.f32 %v159, 1e-24
      %v188 = vmax.f32 %v161, 1e-24
      %v189 = vmax.f32 %v163, 1e-24
      %v190 = vmax.f32 %v165, 1e-24
      %v191 = vmax.f32 %v167, 1e-24
      %v192 = vmax.f32 %v169, 1e-24
      %v193 = vmax.f32 %v171, 1e-24
      %v194 = vmax.f32 %v173, 1e-24
      %v195 = vmax.f32 %v175, 1e-24
      %v196 = vmax.f32 %v177, 1e-24
      %v197 = vmax.f32 %v179, 1e-24
      %v198 = vmax.f32 %v181, 1e-24
      %v199 = vmax.f32 %v183, 1e-24
      %v200 = vrsqrt.pop %v184
      %v201 = vrsqrt.pop %v185
      %v202 = vrsqrt.pop %v186
      %v203 = vrsqrt.pop %v187
      %v204 = vrsqrt.pop %v188
      %v205 = vrsqrt.pop %v189
      %v206 = vrsqrt.pop %v190
      %v207 = vrsqrt.pop %v191
      %v208 = vrsqrt.pop %v192
      %v209 = vrsqrt.pop %v193
      %v210 = vrsqrt.pop %v194
      %v211 = vrsqrt.pop %v195
      %v212 = vrsqrt.pop %v196
      %v213 = vrsqrt.pop %v197
      %v214 = vrsqrt.pop %v198
      %v215 = vrsqrt.pop %v199
      %vm216 = vcmask 7168
      %217 = vst.msk [vmem:[%s118] sm:$0xff] %vm216, %v200
      %218 = vst.msk [vmem:[%s118 + $0x8] sm:$0xff] %vm216, %v201
      %219 = vst.msk [vmem:[%s118 + $0x10] sm:$0xff] %vm216, %v202
      %220 = vst.msk [vmem:[%s118 + $0x18] sm:$0xff] %vm216, %v203
      %221 = vst.msk [vmem:[%s118 + $0x20] sm:$0xff] %vm216, %v204
      %222 = vst.msk [vmem:[%s118 + $0x28] sm:$0xff] %vm216, %v205
      %223 = vst.msk [vmem:[%s118 + $0x30] sm:$0xff] %vm216, %v206
      %224 = vst.msk [vmem:[%s118 + $0x38] sm:$0xff] %vm216, %v207
      %225 = vst.msk [vmem:[%s118 + $0x40] sm:$0xff] %vm216, %v208
      %226 = vst.msk [vmem:[%s118 + $0x48] sm:$0xff] %vm216, %v209
      %227 = vst.msk [vmem:[%s118 + $0x50] sm:$0xff] %vm216, %v210
      %228 = vst.msk [vmem:[%s118 + $0x58] sm:$0xff] %vm216, %v211
      %229 = vst.msk [vmem:[%s118 + $0x60] sm:$0xff] %vm216, %v212
      %230 = vst.msk [vmem:[%s118 + $0x68] sm:$0xff] %vm216, %v213
      %231 = vst.msk [vmem:[%s118 + $0x70] sm:$0xff] %vm216, %v214
      %232 = vst.msk [vmem:[%s118 + $0x78] sm:$0xff] %vm216, %v215
      %s233 = smul.u32 16, %s12
      %p234 = scmp.lt.s32.totalorder %s233, 63
      %s235 = scalar_select %p234, %s233, 63
      %s236 = smul.addr %s235, 8
      %s237 = scalar_lea.vmem %s1, %s236
      // Predicated region
      $region25: #{arc_margin_product.4} parent=23 // pred_check
        %p238 = pneg %p56
      $region26: #{arc_margin_product.4} parent=23 // pred_check_branch
        %240 = sbr.rel (%p238) target = $region28
      $region27: #{arc_margin_product.4} parent=23 // pred_region
        %s241 = smul.u32 16, %s12
      $region28: #{arc_margin_product.4} parent=23 // pred_fallthru
        _
    $region24: #{arc_margin_product.4} parent=5 // pred_fallthru
      _
    %p242 = scmp.le.s32.totalorder 2, %s7
    // Predicated region
    $region29: #{arc_margin_product.4} parent=5 // pred_check
      %p243 = pneg %p242
    $region30: #{arc_margin_product.4} parent=5 // pred_check_branch
      %245 = sbr.rel (%p243) target = $region32
    $region31: #{arc_margin_product.4} parent=5 // pred_region
      %s246 = ssub.s32 %s7, 2
      // Predicated region
      $region33: #{arc_margin_product.4} parent=31 // pred_check
        %p247 = pneg %p62
      $region34: #{arc_margin_product.4} parent=31 // pred_check_branch
        %249 = sbr.rel (%p247) target = $region36
      $region35: #{arc_margin_product.4} parent=31 // pred_region
        %s250 = smul.u32 16, %s13
        %p251 = scmp.lt.s32.totalorder %s250, 63
        %s252 = scalar_select %p251, %s250, 63
        %s253 = smul.addr %s252, 8
        %s254 = scalar_lea.vmem %s1, %s253
      $region36: #{arc_margin_product.4} parent=31 // pred_fallthru
        _
    $region32: #{arc_margin_product.4} parent=5 // pred_fallthru
      _
  $region6: #{arc_margin_product.4} parent=0 // loop_footer
    %s11 = sadd.s32 1, %s7
  $region7: #{arc_margin_product.4} parent=0 // loop_footer_branch
    %6 = sbr.rel target = $region3
  $region8: #{arc_margin_product.4} parent=0 // loop_exit
    _

// kernel: arc_margin_product.3
$region0: #{arc_margin_product.3}
  #allocation0 [shape = 'u32[]', space=smem, size = 0x4, offset = 0x4, fixed_abs, tag = 'smem constant byte address 0x4 - core index']
  #allocation1 [shape = 'u32[144,128]{1,0:T(1,128)}', space=vmem, size = 0x12000, scoped, tag = 'internal scratch']
  %s0 = inlined_call_operand.vmem [shape: f32[128,128], index: 0, kind: input, shape index: {}]
  %s1 = inlined_call_operand.vmem [shape: f32[128,1], index: 1, kind: output, shape index: {}]
  %s2 = sld [smem:[#allocation0]]
  $region14: #{arc_margin_product.3} parent=0
    _
  %s4 = ssub.s32 1, %s2
  %s5 = scalar_select 0, %s4, %s2
  // Predicated region
  $region2: #{arc_margin_product.3} parent=0 // pred_check
    _
  $region3: #{arc_margin_product.3} parent=0 // pred_check_branch
    %7 = sbr.rel (0) target = $region5
  $region4: #{arc_margin_product.3} parent=0 // pred_region
    _
  $region5: #{arc_margin_product.3} parent=0 // pred_fallthru
    _
  %v8 = vld [vmem:[%s0] sm:$0xff]
  %v9 = vld [vmem:[%s0 + $0x8] sm:$0xff]
  %v10 = vld [vmem:[%s0 + $0x10] sm:$0xff]
  %v11 = vld [vmem:[%s0 + $0x18] sm:$0xff]
  %v12 = vld [vmem:[%s0 + $0x20] sm:$0xff]
  %v13 = vld [vmem:[%s0 + $0x28] sm:$0xff]
  %v14 = vld [vmem:[%s0 + $0x30] sm:$0xff]
  %v15 = vld [vmem:[%s0 + $0x38] sm:$0xff]
  %v16 = vld [vmem:[%s0 + $0x40] sm:$0xff]
  %v17 = vld [vmem:[%s0 + $0x48] sm:$0xff]
  %v18 = vld [vmem:[%s0 + $0x50] sm:$0xff]
  %v19 = vld [vmem:[%s0 + $0x58] sm:$0xff]
  %v20 = vld [vmem:[%s0 + $0x60] sm:$0xff]
  %v21 = vld [vmem:[%s0 + $0x68] sm:$0xff]
  %v22 = vld [vmem:[%s0 + $0x70] sm:$0xff]
  %v23 = vld [vmem:[%s0 + $0x78] sm:$0xff]
  %v24 = vmul.f32 %v8, %v8
  %v25 = vmul.f32 %v9, %v9
  %v26 = vmul.f32 %v10, %v10
  %v27 = vmul.f32 %v11, %v11
  %v28 = vmul.f32 %v12, %v12
  %v29 = vmul.f32 %v13, %v13
  %v30 = vmul.f32 %v14, %v14
  %v31 = vmul.f32 %v15, %v15
  %v32 = vmul.f32 %v16, %v16
  %v33 = vmul.f32 %v17, %v17
  %v34 = vmul.f32 %v18, %v18
  %v35 = vmul.f32 %v19, %v19
  %v36 = vmul.f32 %v20, %v20
  %v37 = vmul.f32 %v21, %v21
  %v38 = vmul.f32 %v22, %v22
  %v39 = vmul.f32 %v23, %v23
  %40 = vadd.xlane.f32.xlu0 %v24
  %v41 = vpop.xlane.xlu0 %40
  %42 = vadd.xlane.f32.xlu0 %v25
  %v43 = vpop.xlane.xlu0 %42
  %44 = vadd.xlane.f32.xlu0 %v26
  %v45 = vpop.xlane.xlu0 %44
  %46 = vadd.xlane.f32.xlu0 %v27
  %v47 = vpop.xlane.xlu0 %46
  %48 = vadd.xlane.f32.xlu0 %v28
  %v49 = vpop.xlane.xlu0 %48
  %50 = vadd.xlane.f32.xlu0 %v29
  %v51 = vpop.xlane.xlu0 %50
  %52 = vadd.xlane.f32.xlu0 %v30
  %v53 = vpop.xlane.xlu0 %52
  %54 = vadd.xlane.f32.xlu0 %v31
  %v55 = vpop.xlane.xlu0 %54
  %56 = vadd.xlane.f32.xlu0 %v32
  %v57 = vpop.xlane.xlu0 %56
  %58 = vadd.xlane.f32.xlu0 %v33
  %v59 = vpop.xlane.xlu0 %58
  %60 = vadd.xlane.f32.xlu0 %v34
  %v61 = vpop.xlane.xlu0 %60
  %62 = vadd.xlane.f32.xlu0 %v35
  %v63 = vpop.xlane.xlu0 %62
  %64 = vadd.xlane.f32.xlu0 %v36
  %v65 = vpop.xlane.xlu0 %64
  %66 = vadd.xlane.f32.xlu0 %v37
  %v67 = vpop.xlane.xlu0 %66
  %68 = vadd.xlane.f32.xlu0 %v38
  %v69 = vpop.xlane.xlu0 %68
  %70 = vadd.xlane.f32.xlu0 %v39
  %v71 = vpop.xlane.xlu0 %70
  %v72 = vmax.f32 %v41, 1e-24
  %v73 = vmax.f32 %v43, 1e-24
  %v74 = vmax.f32 %v45, 1e-24
  %v75 = vmax.f32 %v47, 1e-24
  %v76 = vmax.f32 %v49, 1e-24
  %v77 = vmax.f32 %v51, 1e-24
  %v78 = vmax.f32 %v53, 1e-24
  %v79 = vmax.f32 %v55, 1e-24
  %v80 = vmax.f32 %v57, 1e-24
  %v81 = vmax.f32 %v59, 1e-24
  %v82 = vmax.f32 %v61, 1e-24
  %v83 = vmax.f32 %v63, 1e-24
  %v84 = vmax.f32 %v65, 1e-24
  %v85 = vmax.f32 %v67, 1e-24
  %v86 = vmax.f32 %v69, 1e-24
  %v87 = vmax.f32 %v71, 1e-24
  %v88 = vrsqrt.pop %v72
  %v89 = vrsqrt.pop %v73
  %v90 = vrsqrt.pop %v74
  %v91 = vrsqrt.pop %v75
  %v92 = vrsqrt.pop %v76
  %v93 = vrsqrt.pop %v77
  %v94 = vrsqrt.pop %v78
  %v95 = vrsqrt.pop %v79
  %v96 = vrsqrt.pop %v80
  %v97 = vrsqrt.pop %v81
  %v98 = vrsqrt.pop %v82
  %v99 = vrsqrt.pop %v83
  %v100 = vrsqrt.pop %v84
  %v101 = vrsqrt.pop %v85
  %v102 = vrsqrt.pop %v86
  %v103 = vrsqrt.pop %v87
  %vm104 = vcmask 7168
  %105 = vst.msk [vmem:[%s1] sm:$0xff] %vm104, %v88
  %106 = vst.msk [vmem:[%s1 + $0x8] sm:$0xff] %vm104, %v89
  %107 = vst.msk [vmem:[%s1 + $0x10] sm:$0xff] %vm104, %v90
  %108 = vst.msk [vmem:[%s1 + $0x18] sm:$0xff] %vm104, %v91
  %109 = vst.msk [vmem:[%s1 + $0x20] sm:$0xff] %vm104, %v92
  %110 = vst.msk [vmem:[%s1 + $0x28] sm:$0xff] %vm104, %v93
  %111 = vst.msk [vmem:[%s1 + $0x30] sm:$0xff] %vm104, %v94
  %112 = vst.msk [vmem:[%s1 + $0x38] sm:$0xff] %vm104, %v95
  %113 = vst.msk [vmem:[%s1 + $0x40] sm:$0xff] %vm104, %v96
  %114 = vst.msk [vmem:[%s1 + $0x48] sm:$0xff] %vm104, %v97
  %115 = vst.msk [vmem:[%s1 + $0x50] sm:$0xff] %vm104, %v98
  %116 = vst.msk [vmem:[%s1 + $0x58] sm:$0xff] %vm104, %v99
  %117 = vst.msk [vmem:[%s1 + $0x60] sm:$0xff] %vm104, %v100
  %118 = vst.msk [vmem:[%s1 + $0x68] sm:$0xff] %vm104, %v101
  %119 = vst.msk [vmem:[%s1 + $0x70] sm:$0xff] %vm104, %v102
  %120 = vst.msk [vmem:[%s1 + $0x78] sm:$0xff] %vm104, %v103
  // Predicated region
  $region6: #{arc_margin_product.3} parent=0 // pred_check
    _
  $region7: #{arc_margin_product.3} parent=0 // pred_check_branch
    %122 = sbr.rel (0) target = $region9
  $region8: #{arc_margin_product.3} parent=0 // pred_region
    _
  $region9: #{arc_margin_product.3} parent=0 // pred_fallthru
    _
  // Predicated region
  $region10: #{arc_margin_product.3} parent=0 // pred_check
    _
  $region11: #{arc_margin_product.3} parent=0 // pred_check_branch
    %124 = sbr.rel (0) target = $region13
  $region12: #{arc_margin_product.3} parent=0 // pred_region
    _
  $region13: #{arc_margin_product.3} parent=0 // pred_fallthru
    _

// kernel: arc_margin_product.5
$region0: #{arc_margin_product.5}
  #allocation0 [shape = 'u32[]', space=smem, size = 0x4, offset = 0x4, fixed_abs, tag = 'smem constant byte address 0x4 - core index']
  #allocation1 [shape = 'u32[144,128]{1,0:T(1,128)}', space=vmem, size = 0x12000, scoped, tag = 'internal scratch']
  #allocation2 [shape = 'f32[128,512]{1,0:T(8,128)}', space=vmem, size = 0x40000, scoped, tag = 'scratch operand']
  %s0 = inlined_call_operand.vmem [shape: f32[128,128], index: 0, kind: input, shape index: {}]
  %s1 = inlined_call_operand.vmem [shape: f32[512,128], index: 1, kind: input, shape index: {}]
  %s2 = inlined_call_operand.vmem [shape: f32[128,1], index: 2, kind: input, shape index: {}]
  %s3 = inlined_call_operand.vmem [shape: f32[1,512], index: 3, kind: input, shape index: {}]
  %s4 = inlined_call_operand.vmem [shape: f32[128,512], index: 4, kind: output, shape index: {}]
  %s5 = sld [smem:[#allocation0]]
  $region34: #{arc_margin_product.5} parent=0
    _
  %s7 = ssub.s32 1, %s5
  %s8 = scalar_select 0, %s7, %s5
  // Predicated region
  $region2: #{arc_margin_product.5} parent=0 // pred_check
    _
  $region3: #{arc_margin_product.5} parent=0 // pred_check_branch
    %10 = sbr.rel (0) target = $region5
  $region4: #{arc_margin_product.5} parent=0 // pred_region
    _
  $region5: #{arc_margin_product.5} parent=0 // pred_fallthru
    _
  // Predicated region
  $region6: #{arc_margin_product.5} parent=0 // pred_check
    _
  $region7: #{arc_margin_product.5} parent=0 // pred_check_branch
    %12 = sbr.rel (0) target = $region9
  $region8: #{arc_margin_product.5} parent=0 // pred_region
    _
  $region9: #{arc_margin_product.5} parent=0 // pred_fallthru
    _
  // Predicated region
  $region10: #{arc_margin_product.5} parent=0 // pred_check
    _
  $region11: #{arc_margin_product.5} parent=0 // pred_check_branch
    %14 = sbr.rel (0) target = $region13
  $region12: #{arc_margin_product.5} parent=0 // pred_region
    _
  $region13: #{arc_margin_product.5} parent=0 // pred_fallthru
    _
  // Predicated region
  $region14: #{arc_margin_product.5} parent=0 // pred_check
    _
  $region15: #{arc_margin_product.5} parent=0 // pred_check_branch
    %16 = sbr.rel (0) target = $region17
  $region16: #{arc_margin_product.5} parent=0 // pred_region
    _
  $region17: #{arc_margin_product.5} parent=0 // pred_fallthru
    _
  %p17 = scmp.eq.s32.totalorder 0, 0
  // Predicated region
  $region18: #{arc_margin_product.5} parent=0 // pred_check
    %p18 = pneg %p17
  $region19: #{arc_margin_product.5} parent=0 // pred_check_branch
    %20 = sbr.rel (%p18) target = $region21
  $region20: #{arc_margin_product.5} parent=0 // pred_region
    %21 = vst [vmem:[#allocation2] sm:$0xff] 0.0
    %22 = vst [vmem:[#allocation2 + $0x8] sm:$0xff] 0.0
    %23 = vst [vmem:[#allocation2 + $0x10] sm:$0xff] 0.0
    %24 = vst [vmem:[#allocation2 + $0x18] sm:$0xff] 0.0
    %25 = vst [vmem:[#allocation2 + $0x20] sm:$0xff] 0.0
    %26 = vst [vmem:[#allocation2 + $0x28] sm:$0xff] 0.0
    %27 = vst [vmem:[#allocation2 + $0x30] sm:$0xff] 0.0
    %28 = vst [vmem:[#allocation2 + $0x38] sm:$0xff] 0.0
    %29 = vst [vmem:[#allocation2 + $0x40] sm:$0xff] 0.0
    %30 = vst [vmem:[#allocation2 + $0x48] sm:$0xff] 0.0
    %31 = vst [vmem:[#allocation2 + $0x50] sm:$0xff] 0.0
    %32 = vst [vmem:[#allocation2 + $0x58] sm:$0xff] 0.0
    %33 = vst [vmem:[#allocation2 + $0x60] sm:$0xff] 0.0
    %34 = vst [vmem:[#allocation2 + $0x68] sm:$0xff] 0.0
    %35 = vst [vmem:[#allocation2 + $0x70] sm:$0xff] 0.0
    %36 = vst [vmem:[#allocation2 + $0x78] sm:$0xff] 0.0
    %37 = vst [vmem:[#allocation2 + $0x80] sm:$0xff] 0.0
    %38 = vst [vmem:[#allocation2 + $0x88] sm:$0xff] 0.0
    %39 = vst [vmem:[#allocation2 + $0x90] sm:$0xff] 0.0
    %40 = vst [vmem:[#allocation2 + $0x98] sm:$0xff] 0.0
    %41 = vst [vmem:[#allocation2 + $0xa0] sm:$0xff] 0.0
    %42 = vst [vmem:[#allocation2 + $0xa8] sm:$0xff] 0.0
    %43 = vst [vmem:[#allocation2 + $0xb0] sm:$0xff] 0.0
    %44 = vst [vmem:[#allocation2 + $0xb8] sm:$0xff] 0.0
    %45 = vst [vmem:[#allocation2 + $0xc0] sm:$0xff] 0.0
    %46 = vst [vmem:[#allocation2 + $0xc8] sm:$0xff] 0.0
    %47 = vst [vmem:[#allocation2 + $0xd0] sm:$0xff] 0.0
    %48 = vst [vmem:[#allocation2 + $0xd8] sm:$0xff] 0.0
    %49 = vst [vmem:[#allocation2 + $0xe0] sm:$0xff] 0.0
    %50 = vst [vmem:[#allocation2 + $0xe8] sm:$0xff] 0.0
    %51 = vst [vmem:[#allocation2 + $0xf0] sm:$0xff] 0.0
    %52 = vst [vmem:[#allocation2 + $0xf8] sm:$0xff] 0.0
    %53 = vst [vmem:[#allocation2 + $0x100] sm:$0xff] 0.0
    %54 = vst [vmem:[#allocation2 + $0x108] sm:$0xff] 0.0
    %55 = vst [vmem:[#allocation2 + $0x110] sm:$0xff] 0.0
    %56 = vst [vmem:[#allocation2 + $0x118] sm:$0xff] 0.0
    %57 = vst [vmem:[#allocation2 + $0x120] sm:$0xff] 0.0
    %58 = vst [vmem:[#allocation2 + $0x128] sm:$0xff] 0.0
    %59 = vst [vmem:[#allocation2 + $0x130] sm:$0xff] 0.0
    %60 = vst [vmem:[#allocation2 + $0x138] sm:$0xff] 0.0
    %61 = vst [vmem:[#allocation2 + $0x140] sm:$0xff] 0.0
    %62 = vst [vmem:[#allocation2 + $0x148] sm:$0xff] 0.0
    %63 = vst [vmem:[#allocation2 + $0x150] sm:$0xff] 0.0
    %64 = vst [vmem:[#allocation2 + $0x158] sm:$0xff] 0.0
    %65 = vst [vmem:[#allocation2 + $0x160] sm:$0xff] 0.0
    %66 = vst [vmem:[#allocation2 + $0x168] sm:$0xff] 0.0
    %67 = vst [vmem:[#allocation2 + $0x170] sm:$0xff] 0.0
    %68 = vst [vmem:[#allocation2 + $0x178] sm:$0xff] 0.0
    %69 = vst [vmem:[#allocation2 + $0x180] sm:$0xff] 0.0
    %70 = vst [vmem:[#allocation2 + $0x188] sm:$0xff] 0.0
    %71 = vst [vmem:[#allocation2 + $0x190] sm:$0xff] 0.0
    %72 = vst [vmem:[#allocation2 + $0x198] sm:$0xff] 0.0
    %73 = vst [vmem:[#allocation2 + $0x1a0] sm:$0xff] 0.0
    %74 = vst [vmem:[#allocation2 + $0x1a8] sm:$0xff] 0.0
    %75 = vst [vmem:[#allocation2 + $0x1b0] sm:$0xff] 0.0
    %76 = vst [vmem:[#allocation2 + $0x1b8] sm:$0xff] 0.0
    %77 = vst [vmem:[#allocation2 + $0x1c0] sm:$0xff] 0.0
    %78 = vst [vmem:[#allocation2 + $0x1c8] sm:$0xff] 0.0
    %79 = vst [vmem:[#allocation2 + $0x1d0] sm:$0xff] 0.0
    %80 = vst [vmem:[#allocation2 + $0x1d8] sm:$0xff] 0.0
    %81 = vst [vmem:[#allocation2 + $0x1e0] sm:$0xff] 0.0
    %82 = vst [vmem:[#allocation2 + $0x1e8] sm:$0xff] 0.0
    %83 = vst [vmem:[#allocation2 + $0x1f0] sm:$0xff] 0.0
    %84 = vst [vmem:[#allocation2 + $0x1f8] sm:$0xff] 0.0
  $region21: #{arc_margin_product.5} parent=0 // pred_fallthru
    _
  %v85 = vld [vmem:[#allocation2] sm:$0xff]
  %v86 = vld [vmem:[#allocation2 + $0x8] sm:$0xff]
  %v87 = vld [vmem:[#allocation2 + $0x10] sm:$0xff]
  %v88 = vld [vmem:[#allocation2 + $0x18] sm:$0xff]
  %v89 = vld [vmem:[#allocation2 + $0x20] sm:$0xff]
  %v90 = vld [vmem:[#allocation2 + $0x28] sm:$0xff]
  %v91 = vld [vmem:[#allocation2 + $0x30] sm:$0xff]
  %v92 = vld [vmem:[#allocation2 + $0x38] sm:$0xff]
  %v93 = vld [vmem:[#allocation2 + $0x40] sm:$0xff]
  %v94 = vld [vmem:[#allocation2 + $0x48] sm:$0xff]
  %v95 = vld [vmem:[#allocation2 + $0x50] sm:$0xff]
  %v96 = vld [vmem:[#allocation2 + $0x58] sm:$0xff]
  %v97 = vld [vmem:[#allocation2 + $0x60] sm:$0xff]
  %v98 = vld [vmem:[#allocation2 + $0x68] sm:$0xff]
  %v99 = vld [vmem:[#allocation2 + $0x70] sm:$0xff]
  %v100 = vld [vmem:[#allocation2 + $0x78] sm:$0xff]
  %v101 = vld [vmem:[#allocation2 + $0x80] sm:$0xff]
  %v102 = vld [vmem:[#allocation2 + $0x88] sm:$0xff]
  %v103 = vld [vmem:[#allocation2 + $0x90] sm:$0xff]
  %v104 = vld [vmem:[#allocation2 + $0x98] sm:$0xff]
  %v105 = vld [vmem:[#allocation2 + $0xa0] sm:$0xff]
  %v106 = vld [vmem:[#allocation2 + $0xa8] sm:$0xff]
  %v107 = vld [vmem:[#allocation2 + $0xb0] sm:$0xff]
  %v108 = vld [vmem:[#allocation2 + $0xb8] sm:$0xff]
  %v109 = vld [vmem:[#allocation2 + $0xc0] sm:$0xff]
  %v110 = vld [vmem:[#allocation2 + $0xc8] sm:$0xff]
  %v111 = vld [vmem:[#allocation2 + $0xd0] sm:$0xff]
  %v112 = vld [vmem:[#allocation2 + $0xd8] sm:$0xff]
  %v113 = vld [vmem:[#allocation2 + $0xe0] sm:$0xff]
  %v114 = vld [vmem:[#allocation2 + $0xe8] sm:$0xff]
  %v115 = vld [vmem:[#allocation2 + $0xf0] sm:$0xff]
  %v116 = vld [vmem:[#allocation2 + $0xf8] sm:$0xff]
  %v117 = vld [vmem:[#allocation2 + $0x100] sm:$0xff]
  %v118 = vld [vmem:[#allocation2 + $0x108] sm:$0xff]
  %v119 = vld [vmem:[#allocation2 + $0x110] sm:$0xff]
  %v120 = vld [vmem:[#allocation2 + $0x118] sm:$0xff]
  %v121 = vld [vmem:[#allocation2 + $0x120] sm:$0xff]
  %v122 = vld [vmem:[#allocation2 + $0x128] sm:$0xff]
  %v123 = vld [vmem:[#allocation2 + $0x130] sm:$0xff]
  %v124 = vld [vmem:[#allocation2 + $0x138] sm:$0xff]
  %v125 = vld [vmem:[#allocation2 + $0x140] sm:$0xff]
  %v126 = vld [vmem:[#allocation2 + $0x148] sm:$0xff]
  %v127 = vld [vmem:[#allocation2 + $0x150] sm:$0xff]
  %v128 = vld [vmem:[#allocation2 + $0x158] sm:$0xff]
  %v129 = vld [vmem:[#allocation2 + $0x160] sm:$0xff]
  %v130 = vld [vmem:[#allocation2 + $0x168] sm:$0xff]
  %v131 = vld [vmem:[#allocation2 + $0x170] sm:$0xff]
  %v132 = vld [vmem:[#allocation2 + $0x178] sm:$0xff]
  %v133 = vld [vmem:[#allocation2 + $0x180] sm:$0xff]
  %v134 = vld [vmem:[#allocation2 + $0x188] sm:$0xff]
  %v135 = vld [vmem:[#allocation2 + $0x190] sm:$0xff]
  %v136 = vld [vmem:[#allocation2 + $0x198] sm:$0xff]
  %v137 = vld [vmem:[#allocation2 + $0x1a0] sm:$0xff]
  %v138 = vld [vmem:[#allocation2 + $0x1a8] sm:$0xff]
  %v139 = vld [vmem:[#allocation2 + $0x1b0] sm:$0xff]
  %v140 = vld [vmem:[#allocation2 + $0x1b8] sm:$0xff]
  %v141 = vld [vmem:[#allocation2 + $0x1c0] sm:$0xff]
  %v142 = vld [vmem:[#allocation2 + $0x1c8] sm:$0xff]
  %v143 = vld [vmem:[#allocation2 + $0x1d0] sm:$0xff]
  %v144 = vld [vmem:[#allocation2 + $0x1d8] sm:$0xff]
  %v145 = vld [vmem:[#allocation2 + $0x1e0] sm:$0xff]
  %v146 = vld [vmem:[#allocation2 + $0x1e8] sm:$0xff]
  %v147 = vld [vmem:[#allocation2 + $0x1f0] sm:$0xff]
  %v148 = vld [vmem:[#allocation2 + $0x1f8] sm:$0xff]
  %v149 = vld [vmem:[%s0] sm:$0xff]
  %v150 = vld [vmem:[%s0 + $0x8] sm:$0xff]
  %v151 = vld [vmem:[%s0 + $0x10] sm:$0xff]
  %v152 = vld [vmem:[%s0 + $0x18] sm:$0xff]
  %v153 = vld [vmem:[%s0 + $0x20] sm:$0xff]
  %v154 = vld [vmem:[%s0 + $0x28] sm:$0xff]
  %v155 = vld [vmem:[%s0 + $0x30] sm:$0xff]
  %v156 = vld [vmem:[%s0 + $0x38] sm:$0xff]
  %v157 = vld [vmem:[%s0 + $0x40] sm:$0xff]
  %v158 = vld [vmem:[%s0 + $0x48] sm:$0xff]
  %v159 = vld [vmem:[%s0 + $0x50] sm:$0xff]
  %v160 = vld [vmem:[%s0 + $0x58] sm:$0xff]
  %v161 = vld [vmem:[%s0 + $0x60] sm:$0xff]
  %v162 = vld [vmem:[%s0 + $0x68] sm:$0xff]
  %v163 = vld [vmem:[%s0 + $0x70] sm:$0xff]
  %v164 = vld [vmem:[%s0 + $0x78] sm:$0xff]
  %v165 = vld [vmem:[%s1] sm:$0xff]
  %v166 = vld [vmem:[%s1 + $0x8] sm:$0xff]
  %v167 = vld [vmem:[%s1 + $0x10] sm:$0xff]
  %v168 = vld [vmem:[%s1 + $0x18] sm:$0xff]
  %v169 = vld [vmem:[%s1 + $0x20] sm:$0xff]
  %v170 = vld [vmem:[%s1 + $0x28] sm:$0xff]
  %v171 = vld [vmem:[%s1 + $0x30] sm:$0xff]
  %v172 = vld [vmem:[%s1 + $0x38] sm:$0xff]
  %v173 = vld [vmem:[%s1 + $0x40] sm:$0xff]
  %v174 = vld [vmem:[%s1 + $0x48] sm:$0xff]
  %v175 = vld [vmem:[%s1 + $0x50] sm:$0xff]
  %v176 = vld [vmem:[%s1 + $0x58] sm:$0xff]
  %v177 = vld [vmem:[%s1 + $0x60] sm:$0xff]
  %v178 = vld [vmem:[%s1 + $0x68] sm:$0xff]
  %v179 = vld [vmem:[%s1 + $0x70] sm:$0xff]
  %v180 = vld [vmem:[%s1 + $0x78] sm:$0xff]
  %v181 = vld [vmem:[%s1 + $0x80] sm:$0xff]
  %v182 = vld [vmem:[%s1 + $0x88] sm:$0xff]
  %v183 = vld [vmem:[%s1 + $0x90] sm:$0xff]
  %v184 = vld [vmem:[%s1 + $0x98] sm:$0xff]
  %v185 = vld [vmem:[%s1 + $0xa0] sm:$0xff]
  %v186 = vld [vmem:[%s1 + $0xa8] sm:$0xff]
  %v187 = vld [vmem:[%s1 + $0xb0] sm:$0xff]
  %v188 = vld [vmem:[%s1 + $0xb8] sm:$0xff]
  %v189 = vld [vmem:[%s1 + $0xc0] sm:$0xff]
  %v190 = vld [vmem:[%s1 + $0xc8] sm:$0xff]
  %v191 = vld [vmem:[%s1 + $0xd0] sm:$0xff]
  %v192 = vld [vmem:[%s1 + $0xd8] sm:$0xff]
  %v193 = vld [vmem:[%s1 + $0xe0] sm:$0xff]
  %v194 = vld [vmem:[%s1 + $0xe8] sm:$0xff]
  %v195 = vld [vmem:[%s1 + $0xf0] sm:$0xff]
  %v196 = vld [vmem:[%s1 + $0xf8] sm:$0xff]
  %v197 = vld [vmem:[%s1 + $0x100] sm:$0xff]
  %v198 = vld [vmem:[%s1 + $0x108] sm:$0xff]
  %v199 = vld [vmem:[%s1 + $0x110] sm:$0xff]
  %v200 = vld [vmem:[%s1 + $0x118] sm:$0xff]
  %v201 = vld [vmem:[%s1 + $0x120] sm:$0xff]
  %v202 = vld [vmem:[%s1 + $0x128] sm:$0xff]
  %v203 = vld [vmem:[%s1 + $0x130] sm:$0xff]
  %v204 = vld [vmem:[%s1 + $0x138] sm:$0xff]
  %v205 = vld [vmem:[%s1 + $0x140] sm:$0xff]
  %v206 = vld [vmem:[%s1 + $0x148] sm:$0xff]
  %v207 = vld [vmem:[%s1 + $0x150] sm:$0xff]
  %v208 = vld [vmem:[%s1 + $0x158] sm:$0xff]
  %v209 = vld [vmem:[%s1 + $0x160] sm:$0xff]
  %v210 = vld [vmem:[%s1 + $0x168] sm:$0xff]
  %v211 = vld [vmem:[%s1 + $0x170] sm:$0xff]
  %v212 = vld [vmem:[%s1 + $0x178] sm:$0xff]
  %v213 = vld [vmem:[%s1 + $0x180] sm:$0xff]
  %v214 = vld [vmem:[%s1 + $0x188] sm:$0xff]
  %v215 = vld [vmem:[%s1 + $0x190] sm:$0xff]
  %v216 = vld [vmem:[%s1 + $0x198] sm:$0xff]
  %v217 = vld [vmem:[%s1 + $0x1a0] sm:$0xff]
  %v218 = vld [vmem:[%s1 + $0x1a8] sm:$0xff]
  %v219 = vld [vmem:[%s1 + $0x1b0] sm:$0xff]
  %v220 = vld [vmem:[%s1 + $0x1b8] sm:$0xff]
  %v221 = vld [vmem:[%s1 + $0x1c0] sm:$0xff]
  %v222 = vld [vmem:[%s1 + $0x1c8] sm:$0xff]
  %v223 = vld [vmem:[%s1 + $0x1d0] sm:$0xff]
  %v224 = vld [vmem:[%s1 + $0x1d8] sm:$0xff]
  %v225 = vld [vmem:[%s1 + $0x1e0] sm:$0xff]
  %v226 = vld [vmem:[%s1 + $0x1e8] sm:$0xff]
  %v227 = vld [vmem:[%s1 + $0x1f0] sm:$0xff]
  %v228 = vld [vmem:[%s1 + $0x1f8] sm:$0xff]
  %229 = vmatprep.subr.mxu0 0.0
  %230 = vmatpush1.xpose.msra.mxu0 %v165
  %231 = vmatprep.subr.mxu0 0.0
  %232 = vmatpush1.xpose.msra.mxu0 %v166
  %233 = vmatprep.subr.mxu0 0.0
  %234 = vmatpush1.xpose.msra.mxu0 %v167
  %235 = vmatprep.subr.mxu0 0.0
  %236 = vmatpush1.xpose.msra.mxu0 %v168
  %237 = vmatprep.subr.mxu0 0.0
  %238 = vmatpush1.xpose.msra.mxu0 %v169
  %239 = vmatprep.subr.mxu0 0.0
  %240 = vmatpush1.xpose.msra.mxu0 %v170
  %241 = vmatprep.subr.mxu0 0.0
  %242 = vmatpush1.xpose.msra.mxu0 %v171
  %243 = vmatprep.subr.mxu0 0.0
  %244 = vmatpush1.xpose.msra.mxu0 %v172
  %245 = vmatprep.subr.mxu0 0.0
  %246 = vmatpush1.xpose.msra.mxu0 %v173
  %247 = vmatprep.subr.mxu0 0.0
  %248 = vmatpush1.xpose.msra.mxu0 %v174
  %249 = vmatprep.subr.mxu0 0.0
  %250 = vmatpush1.xpose.msra.mxu0 %v175
  %251 = vmatprep.subr.mxu0 0.0
  %252 = vmatpush1.xpose.msra.mxu0 %v176
  %253 = vmatprep.subr.mxu0 0.0
  %254 = vmatpush1.xpose.msra.mxu0 %v177
  %255 = vmatprep.subr.mxu0 0.0
  %256 = vmatpush1.xpose.msra.mxu0 %v178
  %257 = vmatprep.subr.mxu0 0.0
  %258 = vmatpush1.xpose.msra.mxu0 %v179
  %259 = vmatprep.subr.mxu0 0.0
  %260 = vmatpush1.xpose.msra.mxu0 %v180
  %261 = vmatprep.subr.mxu0 0.0
  %262 = vmatpush1.xpose.msra.mxu0 %v181
  %263 = vmatprep.subr.mxu0 0.0
  %264 = vmatpush1.xpose.msra.mxu0 %v182
  %265 = vmatprep.subr.mxu0 0.0
  %266 = vmatpush1.xpose.msra.mxu0 %v183
  %267 = vmatprep.subr.mxu0 0.0
  %268 = vmatpush1.xpose.msra.mxu0 %v184
  %269 = vmatprep.subr.mxu0 0.0
  %270 = vmatpush1.xpose.msra.mxu0 %v185
  %271 = vmatprep.subr.mxu0 0.0
  %272 = vmatpush1.xpose.msra.mxu0 %v186
  %273 = vmatprep.subr.mxu0 0.0
  %274 = vmatpush1.xpose.msra.mxu0 %v187
  %275 = vmatprep.subr.mxu0 0.0
  %276 = vmatpush1.xpose.msra.mxu0 %v188
  %277 = vmatprep.subr.mxu0 0.0
  %278 = vmatpush1.xpose.msra.mxu0 %v189
  %279 = vmatprep.subr.mxu0 0.0
  %280 = vmatpush1.xpose.msra.mxu0 %v190
  %281 = vmatprep.subr.mxu0 0.0
  %282 = vmatpush1.xpose.msra.mxu0 %v191
  %283 = vmatprep.subr.mxu0 0.0
  %284 = vmatpush1.xpose.msra.mxu0 %v192
  %285 = vmatprep.subr.mxu0 0.0
  %286 = vmatpush1.xpose.msra.mxu0 %v193
  %287 = vmatprep.subr.mxu0 0.0
  %288 = vmatpush1.xpose.msra.mxu0 %v194
  %289 = vmatprep.subr.mxu0 0.0
  %290 = vmatpush1.xpose.msra.mxu0 %v195
  %291 = vmatprep.subr.mxu0 0.0
  %292 = vmatpush1.xpose.msra.mxu0 %v196
  %293 = vmatprep.mubr.f32.mxu0 0.0
  %294 = vmatmul.mubr.f32.gmra.mrb[0].mxu0 %v149
  %v295 = vpop.f32.mrb[0].mxu0
  %v296 = vadd.f32 0.0, %v295
  %v297 = vpop.f32.mrb[0].mxu0
  %v298 = vadd.f32 0.0, %v297
  %299 = vmatprep.mubr.f32.mxu0 0.0
  %300 = vmatmul.mubr.f32.gmra.mrb[0].mxu0 %v150
  %v301 = vpop.f32.mrb[0].mxu0
  %v302 = vadd.f32 0.0, %v301
  %v303 = vpop.f32.mrb[0].mxu0
  %v304 = vadd.f32 0.0, %v303
  %305 = vmatprep.mubr.f32.mxu0 0.0
  %306 = vmatmul.mubr.f32.gmra.mrb[0].mxu0 %v151
  %v307 = vpop.f32.mrb[0].mxu0
  %v308 = vadd.f32 0.0, %v307
  %v309 = vpop.f32.mrb[0].mxu0
  %v310 = vadd.f32 0.0, %v309
  %311 = vmatprep.mubr.f32.mxu0 0.0
  %312 = vmatmul.mubr.f32.gmra.mrb[0].mxu0 %v152
  %v313 = vpop.f32.mrb[0].mxu0
  %v314 = vadd.f32 0.0, %v313
  %v315 = vpop.f32.mrb[0].mxu0
  %v316 = vadd.f32 0.0, %v315
  %317 = vmatprep.mubr.f32.mxu0 0.0
  %318 = vmatmul.mubr.f32.gmra.mrb[0].mxu0 %v153
  %v319 = vpop.f32.mrb[0].mxu0
  %v320 = vadd.f32 0.0, %v319
  %v321 = vpop.f32.mrb[0].mxu0
  %v322 = vadd.f32 0.0, %v321
  %323 = vmatprep.mubr.f32.mxu0 0.0
  %324 = vmatmul.mubr.f32.gmra.mrb[0].mxu0 %v154
  %v325 = vpop.f32.mrb[0].mxu0
  %v326 = vadd.f32 0.0, %v325
  %v327 = vpop.f32.mrb[0].mxu0
  %v328 = vadd.f32 0.0, %v327
  %329 = vmatprep.mubr.f32.mxu0 0.0
  %330 = vmatmul.mubr.f32.gmra.mrb[0].mxu0 %v155
  %v331 = vpop.f32.mrb[0].mxu0
  %v332 = vadd.f32 0.0, %v331
  %v333 = vpop.f32.mrb[0].mxu0
  %v334 = vadd.f32 0.0, %v333
  %335 = vmatprep.mubr.f32.mxu0 0.0
  %336 = vmatmul.mubr.f32.gmra.mrb[0].mxu0 %v156
  %v337 = vpop.f32.mrb[0].mxu0
  %v338 = vadd.f32 0.0, %v337
  %v339 = vpop.f32.mrb[0].mxu0
  %v340 = vadd.f32 0.0, %v339
  %341 = vmatprep.mubr.f32.mxu0 0.0
  %342 = vmatmul.mubr.f32.gmra.mrb[0].mxu0 %v157
  %v343 = vpop.f32.mrb[0].mxu0
  %v344 = vadd.f32 0.0, %v343
  %v345 = vpop.f32.mrb[0].mxu0
  %v346 = vadd.f32 0.0, %v345
  %347 = vmatprep.mubr.f32.mxu0 0.0
  %348 = vmatmul.mubr.f32.gmra.mrb[0].mxu0 %v158
  %v349 = vpop.f32.mrb[0].mxu0
  %v350 = vadd.f32 0.0, %v349
  %v351 = vpop.f32.mrb[0].mxu0
  %v352 = vadd.f32 0.0, %v351
  %353 = vmatprep.mubr.f32.mxu0 0.0
  %354 = vmatmul.mubr.f32.gmra.mrb[0].mxu0 %v159
  %v355 = vpop.f32.mrb[0].mxu0
  %v356 = vadd.f32 0.0, %v355
  %v357 = vpop.f32.mrb[0].mxu0
  %v358 = vadd.f32 0.0, %v357
  %359 = vmatprep.mubr.f32.mxu0 0.0
  %360 = vmatmul.mubr.f32.gmra.mrb[0].mxu0 %v160
  %v361 = vpop.f32.mrb[0].mxu0
  %v362 = vadd.f32 0.0, %v361
  %v363 = vpop.f32.mrb[0].mxu0
  %v364 = vadd.f32 0.0, %v363
  %365 = vmatprep.mubr.f32.mxu0 0.0
  %366 = vmatmul.mubr.f32.gmra.mrb[0].mxu0 %v161
  %v367 = vpop.f32.mrb[0].mxu0
  %v368 = vadd.f32 0.0, %v367
  %v369 = vpop.f32.mrb[0].mxu0
  %v370 = vadd.f32 0.0, %v369
  %371 = vmatprep.mubr.f32.mxu0 0.0
  %372 = vmatmul.mubr.f32.gmra.mrb[0].mxu0 %v162
  %v373 = vpop.f32.mrb[0].mxu0
  %v374 = vadd.f32 0.0, %v373
  %v375 = vpop.f32.mrb[0].mxu0
  %v376 = vadd.f32 0.0, %v375
  %377 = vmatprep.mubr.f32.mxu0 0.0
  %378 = vmatmul.mubr.f32.gmra.mrb[0].mxu0 %v163
  %v379 = vpop.f32.mrb[0].mxu0
  %v380 = vadd.f32 0.0, %v379
  %v381 = vpop.f32.mrb[0].mxu0
  %v382 = vadd.f32 0.0, %v381
  %383 = vmatprep.mubr.f32.mxu0 0.0
  %384 = vmatmul.mubr.f32.gmra.mrb[0].mxu0 %v164
  %v385 = vpop.f32.mrb[0].mxu0
  %v386 = vadd.f32 0.0, %v385
  %v387 = vpop.f32.mrb[0].mxu0
  %v388 = vadd.f32 0.0, %v387
  %389 = vdwg.mxu0
  %390 = vmatprep.subr.mxu0 0.0
  %391 = vmatpush1.xpose.msra.mxu0 %v197
  %392 = vmatprep.subr.mxu0 0.0
  %393 = vmatpush1.xpose.msra.mxu0 %v198
  %394 = vmatprep.subr.mxu0 0.0
  %395 = vmatpush1.xpose.msra.mxu0 %v199
  %396 = vmatprep.subr.mxu0 0.0
  %397 = vmatpush1.xpose.msra.mxu0 %v200
  %398 = vmatprep.subr.mxu0 0.0
  %399 = vmatpush1.xpose.msra.mxu0 %v201
  %400 = vmatprep.subr.mxu0 0.0
  %401 = vmatpush1.xpose.msra.mxu0 %v202
  %402 = vmatprep.subr.mxu0 0.0
  %403 = vmatpush1.xpose.msra.mxu0 %v203
  %404 = vmatprep.subr.mxu0 0.0
  %405 = vmatpush1.xpose.msra.mxu0 %v204
  %406 = vmatprep.subr.mxu0 0.0
  %407 = vmatpush1.xpose.msra.mxu0 %v205
  %408 = vmatprep.subr.mxu0 0.0
  %409 = vmatpush1.xpose.msra.mxu0 %v206
  %410 = vmatprep.subr.mxu0 0.0
  %411 = vmatpush1.xpose.msra.mxu0 %v207
  %412 = vmatprep.subr.mxu0 0.0
  %413 = vmatpush1.xpose.msra.mxu0 %v208
  %414 = vmatprep.subr.mxu0 0.0
  %415 = vmatpush1.xpose.msra.mxu0 %v209
  %416 = vmatprep.subr.mxu0 0.0
  %417 = vmatpush1.xpose.msra.mxu0 %v210
  %418 = vmatprep.subr.mxu0 0.0
  %419 = vmatpush1.xpose.msra.mxu0 %v211
  %420 = vmatprep.subr.mxu0 0.0
  %421 = vmatpush1.xpose.msra.mxu0 %v212
  %422 = vmatprep.subr.mxu0 0.0
  %423 = vmatpush1.xpose.msra.mxu0 %v213
  %424 = vmatprep.subr.mxu0 0.0
  %425 = vmatpush1.xpose.msra.mxu0 %v214
  %426 = vmatprep.subr.mxu0 0.0
  %427 = vmatpush1.xpose.msra.mxu0 %v215
  %428 = vmatprep.subr.mxu0 0.0
  %429 = vmatpush1.xpose.msra.mxu0 %v216
  %430 = vmatprep.subr.mxu0 0.0
  %431 = vmatpush1.xpose.msra.mxu0 %v217
  %432 = vmatprep.subr.mxu0 0.0
  %433 = vmatpush1.xpose.msra.mxu0 %v218
  %434 = vmatprep.subr.mxu0 0.0
  %435 = vmatpush1.xpose.msra.mxu0 %v219
  %436 = vmatprep.subr.mxu0 0.0
  %437 = vmatpush1.xpose.msra.mxu0 %v220
  %438 = vmatprep.subr.mxu0 0.0
  %439 = vmatpush1.xpose.msra.mxu0 %v221
  %440 = vmatprep.subr.mxu0 0.0
  %441 = vmatpush1.xpose.msra.mxu0 %v222
  %442 = vmatprep.subr.mxu0 0.0
  %443 = vmatpush1.xpose.msra.mxu0 %v223
  %444 = vmatprep.subr.mxu0 0.0
  %445 = vmatpush1.xpose.msra.mxu0 %v224
  %446 = vmatprep.subr.mxu0 0.0
  %447 = vmatpush1.xpose.msra.mxu0 %v225
  %448 = vmatprep.subr.mxu0 0.0
  %449 = vmatpush1.xpose.msra.mxu0 %v226
  %450 = vmatprep.subr.mxu0 0.0
  %451 = vmatpush1.xpose.msra.mxu0 %v227
  %452 = vmatprep.subr.mxu0 0.0
  %453 = vmatpush1.xpose.msra.mxu0 %v228
  %454 = vmatprep.mubr.f32.mxu0 0.0
  %455 = vmatmul.mubr.f32.gmra.mrb[0].mxu0 %v149
  %v456 = vpop.f32.mrb[0].mxu0
  %v457 = vadd.f32 0.0, %v456
  %v458 = vpop.f32.mrb[0].mxu0
  %v459 = vadd.f32 0.0, %v458
  %460 = vmatprep.mubr.f32.mxu0 0.0
  %461 = vmatmul.mubr.f32.gmra.mrb[0].mxu0 %v150
  %v462 = vpop.f32.mrb[0].mxu0
  %v463 = vadd.f32 0.0, %v462
  %v464 = vpop.f32.mrb[0].mxu0
  %v465 = vadd.f32 0.0, %v464
  %466 = vmatprep.mubr.f32.mxu0 0.0
  %467 = vmatmul.mubr.f32.gmra.mrb[0].mxu0 %v151
  %v468 = vpop.f32.mrb[0].mxu0
  %v469 = vadd.f32 0.0, %v468
  %v470 = vpop.f32.mrb[0].mxu0
  %v471 = vadd.f32 0.0, %v470
  %472 = vmatprep.mubr.f32.mxu0 0.0
  %473 = vmatmul.mubr.f32.gmra.mrb[0].mxu0 %v152
  %v474 = vpop.f32.mrb[0].mxu0
  %v475 = vadd.f32 0.0, %v474
  %v476 = vpop.f32.mrb[0].mxu0
  %v477 = vadd.f32 0.0, %v476
  %478 = vmatprep.mubr.f32.mxu0 0.0
  %479 = vmatmul.mubr.f32.gmra.mrb[0].mxu0 %v153
  %v480 = vpop.f32.mrb[0].mxu0
  %v481 = vadd.f32 0.0, %v480
  %v482 = vpop.f32.mrb[0].mxu0
  %v483 = vadd.f32 0.0, %v482
  %484 = vmatprep.mubr.f32.mxu0 0.0
  %485 = vmatmul.mubr.f32.gmra.mrb[0].mxu0 %v154
  %v486 = vpop.f32.mrb[0].mxu0
  %v487 = vadd.f32 0.0, %v486
  %v488 = vpop.f32.mrb[0].mxu0
  %v489 = vadd.f32 0.0, %v488
  %490 = vmatprep.mubr.f32.mxu0 0.0
  %491 = vmatmul.mubr.f32.gmra.mrb[0].mxu0 %v155
  %v492 = vpop.f32.mrb[0].mxu0
  %v493 = vadd.f32 0.0, %v492
  %v494 = vpop.f32.mrb[0].mxu0
  %v495 = vadd.f32 0.0, %v494
  %496 = vmatprep.mubr.f32.mxu0 0.0
  %497 = vmatmul.mubr.f32.gmra.mrb[0].mxu0 %v156
  %v498 = vpop.f32.mrb[0].mxu0
  %v499 = vadd.f32 0.0, %v498
  %v500 = vpop.f32.mrb[0].mxu0
  %v501 = vadd.f32 0.0, %v500
  %502 = vmatprep.mubr.f32.mxu0 0.0
  %503 = vmatmul.mubr.f32.gmra.mrb[0].mxu0 %v157
  %v504 = vpop.f32.mrb[0].mxu0
  %v505 = vadd.f32 0.0, %v504
  %v506 = vpop.f32.mrb[0].mxu0
  %v507 = vadd.f32 0.0, %v506
  %508 = vmatprep.mubr.f32.mxu0 0.0
  %509 = vmatmul.mubr.f32.gmra.mrb[0].mxu0 %v158
  %v510 = vpop.f32.mrb[0].mxu0
  %v511 = vadd.f32 0.0, %v510
  %v512 = vpop.f32.mrb[0].mxu0
  %v513 = vadd.f32 0.0, %v512
  %514 = vmatprep.mubr.f32.mxu0 0.0
  %515 = vmatmul.mubr.f32.gmra.mrb[0].mxu0 %v159
  %v516 = vpop.f32.mrb[0].mxu0
  %v517 = vadd.f32 0.0, %v516
  %v518 = vpop.f32.mrb[0].mxu0
  %v519 = vadd.f32 0.0, %v518
  %520 = vmatprep.mubr.f32.mxu0 0.0
  %521 = vmatmul.mubr.f32.gmra.mrb[0].mxu0 %v160
  %v522 = vpop.f32.mrb[0].mxu0
  %v523 = vadd.f32 0.0, %v522
  %v524 = vpop.f32.mrb[0].mxu0
  %v525 = vadd.f32 0.0, %v524
  %526 = vmatprep.mubr.f32.mxu0 0.0
  %527 = vmatmul.mubr.f32.gmra.mrb[0].mxu0 %v161
  %v528 = vpop.f32.mrb[0].mxu0
  %v529 = vadd.f32 0.0, %v528
  %v530 = vpop.f32.mrb[0].mxu0
  %v531 = vadd.f32 0.0, %v530
  %532 = vmatprep.mubr.f32.mxu0 0.0
  %533 = vmatmul.mubr.f32.gmra.mrb[0].mxu0 %v162
  %v534 = vpop.f32.mrb[0].mxu0
  %v535 = vadd.f32 0.0, %v534
  %v536 = vpop.f32.mrb[0].mxu0
  %v537 = vadd.f32 0.0, %v536
  %538 = vmatprep.mubr.f32.mxu0 0.0
  %539 = vmatmul.mubr.f32.gmra.mrb[0].mxu0 %v163
  %v540 = vpop.f32.mrb[0].mxu0
  %v541 = vadd.f32 0.0, %v540
  %v542 = vpop.f32.mrb[0].mxu0
  %v543 = vadd.f32 0.0, %v542
  %544 = vmatprep.mubr.f32.mxu0 0.0
  %545 = vmatmul.mubr.f32.gmra.mrb[0].mxu0 %v164
  %v546 = vpop.f32.mrb[0].mxu0
  %v547 = vadd.f32 0.0, %v546
  %v548 = vpop.f32.mrb[0].mxu0
  %v549 = vadd.f32 0.0, %v548
  %550 = vdwg.mxu0
  %v551 = vadd.f32 %v85, %v296
  %v552 = vadd.f32 %v86, %v298
  %v553 = vadd.f32 %v87, %v457
  %v554 = vadd.f32 %v88, %v459
  %v555 = vadd.f32 %v89, %v302
  %v556 = vadd.f32 %v90, %v304
  %v557 = vadd.f32 %v91, %v463
  %v558 = vadd.f32 %v92, %v465
  %v559 = vadd.f32 %v93, %v308
  %v560 = vadd.f32 %v94, %v310
  %v561 = vadd.f32 %v95, %v469
  %v562 = vadd.f32 %v96, %v471
  %v563 = vadd.f32 %v97, %v314
  %v564 = vadd.f32 %v98, %v316
  %v565 = vadd.f32 %v99, %v475
  %v566 = vadd.f32 %v100, %v477
  %v567 = vadd.f32 %v101, %v320
  %v568 = vadd.f32 %v102, %v322
  %v569 = vadd.f32 %v103, %v481
  %v570 = vadd.f32 %v104, %v483
  %v571 = vadd.f32 %v105, %v326
  %v572 = vadd.f32 %v106, %v328
  %v573 = vadd.f32 %v107, %v487
  %v574 = vadd.f32 %v108, %v489
  %v575 = vadd.f32 %v109, %v332
  %v576 = vadd.f32 %v110, %v334
  %v577 = vadd.f32 %v111, %v493
  %v578 = vadd.f32 %v112, %v495
  %v579 = vadd.f32 %v113, %v338
  %v580 = vadd.f32 %v114, %v340
  %v581 = vadd.f32 %v115, %v499
  %v582 = vadd.f32 %v116, %v501
  %v583 = vadd.f32 %v117, %v344
  %v584 = vadd.f32 %v118, %v346
  %v585 = vadd.f32 %v119, %v505
  %v586 = vadd.f32 %v120, %v507
  %v587 = vadd.f32 %v121, %v350
  %v588 = vadd.f32 %v122, %v352
  %v589 = vadd.f32 %v123, %v511
  %v590 = vadd.f32 %v124, %v513
  %v591 = vadd.f32 %v125, %v356
  %v592 = vadd.f32 %v126, %v358
  %v593 = vadd.f32 %v127, %v517
  %v594 = vadd.f32 %v128, %v519
  %v595 = vadd.f32 %v129, %v362
  %v596 = vadd.f32 %v130, %v364
  %v597 = vadd.f32 %v131, %v523
  %v598 = vadd.f32 %v132, %v525
  %v599 = vadd.f32 %v133, %v368
  %v600 = vadd.f32 %v134, %v370
  %v601 = vadd.f32 %v135, %v529
  %v602 = vadd.f32 %v136, %v531
  %v603 = vadd.f32 %v137, %v374
  %v604 = vadd.f32 %v138, %v376
  %v605 = vadd.f32 %v139, %v535
  %v606 = vadd.f32 %v140, %v537
  %v607 = vadd.f32 %v141, %v380
  %v608 = vadd.f32 %v142, %v382
  %v609 = vadd.f32 %v143, %v541
  %v610 = vadd.f32 %v144, %v543
  %v611 = vadd.f32 %v145, %v386
  %v612 = vadd.f32 %v146, %v388
  %v613 = vadd.f32 %v147, %v547
  %v614 = vadd.f32 %v148, %v549
  %615 = vst [vmem:[#allocation2] sm:$0xff] %v551
  %616 = vst [vmem:[#allocation2 + $0x8] sm:$0xff] %v552
  %617 = vst [vmem:[#allocation2 + $0x10] sm:$0xff] %v553
  %618 = vst [vmem:[#allocation2 + $0x18] sm:$0xff] %v554
  %619 = vst [vmem:[#allocation2 + $0x20] sm:$0xff] %v555
  %620 = vst [vmem:[#allocation2 + $0x28] sm:$0xff] %v556
  %621 = vst [vmem:[#allocation2 + $0x30] sm:$0xff] %v557
  %622 = vst [vmem:[#allocation2 + $0x38] sm:$0xff] %v558
  %623 = vst [vmem:[#allocation2 + $0x40] sm:$0xff] %v559
  %624 = vst [vmem:[#allocation2 + $0x48] sm:$0xff] %v560
  %625 = vst [vmem:[#allocation2 + $0x50] sm:$0xff] %v561
  %626 = vst [vmem:[#allocation2 + $0x58] sm:$0xff] %v562
  %627 = vst [vmem:[#allocation2 + $0x60] sm:$0xff] %v563
  %628 = vst [vmem:[#allocation2 + $0x68] sm:$0xff] %v564
  %629 = vst [vmem:[#allocation2 + $0x70] sm:$0xff] %v565
  %630 = vst [vmem:[#allocation2 + $0x78] sm:$0xff] %v566
  %631 = vst [vmem:[#allocation2 + $0x80] sm:$0xff] %v567
  %632 = vst [vmem:[#allocation2 + $0x88] sm:$0xff] %v568
  %633 = vst [vmem:[#allocation2 + $0x90] sm:$0xff] %v569
  %634 = vst [vmem:[#allocation2 + $0x98] sm:$0xff] %v570
  %635 = vst [vmem:[#allocation2 + $0xa0] sm:$0xff] %v571
  %636 = vst [vmem:[#allocation2 + $0xa8] sm:$0xff] %v572
  %637 = vst [vmem:[#allocation2 + $0xb0] sm:$0xff] %v573
  %638 = vst [vmem:[#allocation2 + $0xb8] sm:$0xff] %v574
  %639 = vst [vmem:[#allocation2 + $0xc0] sm:$0xff] %v575
  %640 = vst [vmem:[#allocation2 + $0xc8] sm:$0xff] %v576
  %641 = vst [vmem:[#allocation2 + $0xd0] sm:$0xff] %v577
  %642 = vst [vmem:[#allocation2 + $0xd8] sm:$0xff] %v578
  %643 = vst [vmem:[#allocation2 + $0xe0] sm:$0xff] %v579
  %644 = vst [vmem:[#allocation2 + $0xe8] sm:$0xff] %v580
  %645 = vst [vmem:[#allocation2 + $0xf0] sm:$0xff] %v581
  %646 = vst [vmem:[#allocation2 + $0xf8] sm:$0xff] %v582
  %647 = vst [vmem:[#allocation2 + $0x100] sm:$0xff] %v583
  %648 = vst [vmem:[#allocation2 + $0x108] sm:$0xff] %v584
  %649 = vst [vmem:[#allocation2 + $0x110] sm:$0xff] %v585
  %650 = vst [vmem:[#allocation2 + $0x118] sm:$0xff] %v586
  %651 = vst [vmem:[#allocation2 + $0x120] sm:$0xff] %v587
  %652 = vst [vmem:[#allocation2 + $0x128] sm:$0xff] %v588
  %653 = vst [vmem:[#allocation2 + $0x130] sm:$0xff] %v589
  %654 = vst [vmem:[#allocation2 + $0x138] sm:$0xff] %v590
  %655 = vst [vmem:[#allocation2 + $0x140] sm:$0xff] %v591
  %656 = vst [vmem:[#allocation2 + $0x148] sm:$0xff] %v592
  %657 = vst [vmem:[#allocation2 + $0x150] sm:$0xff] %v593
  %658 = vst [vmem:[#allocation2 + $0x158] sm:$0xff] %v594
  %659 = vst [vmem:[#allocation2 + $0x160] sm:$0xff] %v595
  %660 = vst [vmem:[#allocation2 + $0x168] sm:$0xff] %v596
  %661 = vst [vmem:[#allocation2 + $0x170] sm:$0xff] %v597
  %662 = vst [vmem:[#allocation2 + $0x178] sm:$0xff] %v598
  %663 = vst [vmem:[#allocation2 + $0x180] sm:$0xff] %v599
  %664 = vst [vmem:[#allocation2 + $0x188] sm:$0xff] %v600
  %665 = vst [vmem:[#allocation2 + $0x190] sm:$0xff] %v601
  %666 = vst [vmem:[#allocation2 + $0x198] sm:$0xff] %v602
  %667 = vst [vmem:[#allocation2 + $0x1a0] sm:$0xff] %v603
  %668 = vst [vmem:[#allocation2 + $0x1a8] sm:$0xff] %v604
  %669 = vst [vmem:[#allocation2 + $0x1b0] sm:$0xff] %v605
  %670 = vst [vmem:[#allocation2 + $0x1b8] sm:$0xff] %v606
  %671 = vst [vmem:[#allocation2 + $0x1c0] sm:$0xff] %v607
  %672 = vst [vmem:[#allocation2 + $0x1c8] sm:$0xff] %v608
  %673 = vst [vmem:[#allocation2 + $0x1d0] sm:$0xff] %v609
  %674 = vst [vmem:[#allocation2 + $0x1d8] sm:$0xff] %v610
  %675 = vst [vmem:[#allocation2 + $0x1e0] sm:$0xff] %v611
  %676 = vst [vmem:[#allocation2 + $0x1e8] sm:$0xff] %v612
  %677 = vst [vmem:[#allocation2 + $0x1f0] sm:$0xff] %v613
  %678 = vst [vmem:[#allocation2 + $0x1f8] sm:$0xff] %v614
  // Predicated region
  $region22: #{arc_margin_product.5} parent=0 // pred_check
    %p679 = pneg %p17
  $region23: #{arc_margin_product.5} parent=0 // pred_check_branch
    %681 = sbr.rel (%p679) target = $region25
  $region24: #{arc_margin_product.5} parent=0 // pred_region
    %v682 = vld [vmem:[#allocation2] sm:$0xff]
    %v683 = vld [vmem:[#allocation2 + $0x8] sm:$0xff]
    %v684 = vld [vmem:[#allocation2 + $0x10] sm:$0xff]
    %v685 = vld [vmem:[#allocation2 + $0x18] sm:$0xff]
    %v686 = vld [vmem:[#allocation2 + $0x20] sm:$0xff]
    %v687 = vld [vmem:[#allocation2 + $0x28] sm:$0xff]
    %v688 = vld [vmem:[#allocation2 + $0x30] sm:$0xff]
    %v689 = vld [vmem:[#allocation2 + $0x38] sm:$0xff]
    %v690 = vld [vmem:[#allocation2 + $0x40] sm:$0xff]
    %v691 = vld [vmem:[#allocation2 + $0x48] sm:$0xff]
    %v692 = vld [vmem:[#allocation2 + $0x50] sm:$0xff]
    %v693 = vld [vmem:[#allocation2 + $0x58] sm:$0xff]
    %v694 = vld [vmem:[#allocation2 + $0x60] sm:$0xff]
    %v695 = vld [vmem:[#allocation2 + $0x68] sm:$0xff]
    %v696 = vld [vmem:[#allocation2 + $0x70] sm:$0xff]
    %v697 = vld [vmem:[#allocation2 + $0x78] sm:$0xff]
    %v698 = vld [vmem:[#allocation2 + $0x80] sm:$0xff]
    %v699 = vld [vmem:[#allocation2 + $0x88] sm:$0xff]
    %v700 = vld [vmem:[#allocation2 + $0x90] sm:$0xff]
    %v701 = vld [vmem:[#allocation2 + $0x98] sm:$0xff]
    %v702 = vld [vmem:[#allocation2 + $0xa0] sm:$0xff]
    %v703 = vld [vmem:[#allocation2 + $0xa8] sm:$0xff]
    %v704 = vld [vmem:[#allocation2 + $0xb0] sm:$0xff]
    %v705 = vld [vmem:[#allocation2 + $0xb8] sm:$0xff]
    %v706 = vld [vmem:[#allocation2 + $0xc0] sm:$0xff]
    %v707 = vld [vmem:[#allocation2 + $0xc8] sm:$0xff]
    %v708 = vld [vmem:[#allocation2 + $0xd0] sm:$0xff]
    %v709 = vld [vmem:[#allocation2 + $0xd8] sm:$0xff]
    %v710 = vld [vmem:[#allocation2 + $0xe0] sm:$0xff]
    %v711 = vld [vmem:[#allocation2 + $0xe8] sm:$0xff]
    %v712 = vld [vmem:[#allocation2 + $0xf0] sm:$0xff]
    %v713 = vld [vmem:[#allocation2 + $0xf8] sm:$0xff]
    %v714 = vld [vmem:[#allocation2 + $0x100] sm:$0xff]
    %v715 = vld [vmem:[#allocation2 + $0x108] sm:$0xff]
    %v716 = vld [vmem:[#allocation2 + $0x110] sm:$0xff]
    %v717 = vld [vmem:[#allocation2 + $0x118] sm:$0xff]
    %v718 = vld [vmem:[#allocation2 + $0x120] sm:$0xff]
    %v719 = vld [vmem:[#allocation2 + $0x128] sm:$0xff]
    %v720 = vld [vmem:[#allocation2 + $0x130] sm:$0xff]
    %v721 = vld [vmem:[#allocation2 + $0x138] sm:$0xff]
    %v722 = vld [vmem:[#allocation2 + $0x140] sm:$0xff]
    %v723 = vld [vmem:[#allocation2 + $0x148] sm:$0xff]
    %v724 = vld [vmem:[#allocation2 + $0x150] sm:$0xff]
    %v725 = vld [vmem:[#allocation2 + $0x158] sm:$0xff]
    %v726 = vld [vmem:[#allocation2 + $0x160] sm:$0xff]
    %v727 = vld [vmem:[#allocation2 + $0x168] sm:$0xff]
    %v728 = vld [vmem:[#allocation2 + $0x170] sm:$0xff]
    %v729 = vld [vmem:[#allocation2 + $0x178] sm:$0xff]
    %v730 = vld [vmem:[#allocation2 + $0x180] sm:$0xff]
    %v731 = vld [vmem:[#allocation2 + $0x188] sm:$0xff]
    %v732 = vld [vmem:[#allocation2 + $0x190] sm:$0xff]
    %v733 = vld [vmem:[#allocation2 + $0x198] sm:$0xff]
    %v734 = vld [vmem:[#allocation2 + $0x1a0] sm:$0xff]
    %v735 = vld [vmem:[#allocation2 + $0x1a8] sm:$0xff]
    %v736 = vld [vmem:[#allocation2 + $0x1b0] sm:$0xff]
    %v737 = vld [vmem:[#allocation2 + $0x1b8] sm:$0xff]
    %v738 = vld [vmem:[#allocation2 + $0x1c0] sm:$0xff]
    %v739 = vld [vmem:[#allocation2 + $0x1c8] sm:$0xff]
    %v740 = vld [vmem:[#allocation2 + $0x1d0] sm:$0xff]
    %v741 = vld [vmem:[#allocation2 + $0x1d8] sm:$0xff]
    %v742 = vld [vmem:[#allocation2 + $0x1e0] sm:$0xff]
    %v743 = vld [vmem:[#allocation2 + $0x1e8] sm:$0xff]
    %v744 = vld [vmem:[#allocation2 + $0x1f0] sm:$0xff]
    %v745 = vld [vmem:[#allocation2 + $0x1f8] sm:$0xff]
    %v746 = vld [vmem:[%s2] sm:$0xff]
    %v747 = vld [vmem:[%s2 + $0x8] sm:$0xff]
    %v748 = vld [vmem:[%s2 + $0x10] sm:$0xff]
    %v749 = vld [vmem:[%s2 + $0x18] sm:$0xff]
    %v750 = vld [vmem:[%s2 + $0x20] sm:$0xff]
    %v751 = vld [vmem:[%s2 + $0x28] sm:$0xff]
    %v752 = vld [vmem:[%s2 + $0x30] sm:$0xff]
    %v753 = vld [vmem:[%s2 + $0x38] sm:$0xff]
    %v754 = vld [vmem:[%s2 + $0x40] sm:$0xff]
    %v755 = vld [vmem:[%s2 + $0x48] sm:$0xff]
    %v756 = vld [vmem:[%s2 + $0x50] sm:$0xff]
    %v757 = vld [vmem:[%s2 + $0x58] sm:$0xff]
    %v758 = vld [vmem:[%s2 + $0x60] sm:$0xff]
    %v759 = vld [vmem:[%s2 + $0x68] sm:$0xff]
    %v760 = vld [vmem:[%s2 + $0x70] sm:$0xff]
    %v761 = vld [vmem:[%s2 + $0x78] sm:$0xff]
    %763 = vset.pattern.permute.xlu0 0
    %764 = vperm.xlu0 %763, %v746
    %v765 = vpop.permute.xlu0 %764
    %768 = vset.pattern.permute.xlu0 0
    %769 = vperm.xlu0 %768, %v747
    %v770 = vpop.permute.xlu0 %769
    %773 = vset.pattern.permute.xlu0 0
    %774 = vperm.xlu0 %773, %v748
    %v775 = vpop.permute.xlu0 %774
    %778 = vset.pattern.permute.xlu0 0
    %779 = vperm.xlu0 %778, %v749
    %v780 = vpop.permute.xlu0 %779
    %783 = vset.pattern.permute.xlu0 0
    %784 = vperm.xlu0 %783, %v750
    %v785 = vpop.permute.xlu0 %784
    %788 = vset.pattern.permute.xlu0 0
    %789 = vperm.xlu0 %788, %v751
    %v790 = vpop.permute.xlu0 %789
    %793 = vset.pattern.permute.xlu0 0
    %794 = vperm.xlu0 %793, %v752
    %v795 = vpop.permute.xlu0 %794
    %798 = vset.pattern.permute.xlu0 0
    %799 = vperm.xlu0 %798, %v753
    %v800 = vpop.permute.xlu0 %799
    %803 = vset.pattern.permute.xlu0 0
    %804 = vperm.xlu0 %803, %v754
    %v805 = vpop.permute.xlu0 %804
    %808 = vset.pattern.permute.xlu0 0
    %809 = vperm.xlu0 %808, %v755
    %v810 = vpop.permute.xlu0 %809
    %813 = vset.pattern.permute.xlu0 0
    %814 = vperm.xlu0 %813, %v756
    %v815 = vpop.permute.xlu0 %814
    %818 = vset.pattern.permute.xlu0 0
    %819 = vperm.xlu0 %818, %v757
    %v820 = vpop.permute.xlu0 %819
    %823 = vset.pattern.permute.xlu0 0
    %824 = vperm.xlu0 %823, %v758
    %v825 = vpop.permute.xlu0 %824
    %828 = vset.pattern.permute.xlu0 0
    %829 = vperm.xlu0 %828, %v759
    %v830 = vpop.permute.xlu0 %829
    %833 = vset.pattern.permute.xlu0 0
    %834 = vperm.xlu0 %833, %v760
    %v835 = vpop.permute.xlu0 %834
    %838 = vset.pattern.permute.xlu0 0
    %839 = vperm.xlu0 %838, %v761
    %v840 = vpop.permute.xlu0 %839
    %v842 = vmul.f32 %v682, %v765
    %v843 = vmul.f32 %v683, %v765
    %v844 = vmul.f32 %v684, %v765
    %v845 = vmul.f32 %v685, %v765
    %v846 = vmul.f32 %v686, %v770
    %v847 = vmul.f32 %v687, %v770
    %v848 = vmul.f32 %v688, %v770
    %v849 = vmul.f32 %v689, %v770
    %v850 = vmul.f32 %v690, %v775
    %v851 = vmul.f32 %v691, %v775
    %v852 = vmul.f32 %v692, %v775
    %v853 = vmul.f32 %v693, %v775
    %v854 = vmul.f32 %v694, %v780
    %v855 = vmul.f32 %v695, %v780
    %v856 = vmul.f32 %v696, %v780
    %v857 = vmul.f32 %v697, %v780
    %v858 = vmul.f32 %v698, %v785
    %v859 = vmul.f32 %v699, %v785
    %v860 = vmul.f32 %v700, %v785
    %v861 = vmul.f32 %v701, %v785
    %v862 = vmul.f32 %v702, %v790
    %v863 = vmul.f32 %v703, %v790
    %v864 = vmul.f32 %v704, %v790
    %v865 = vmul.f32 %v705, %v790
    %v866 = vmul.f32 %v706, %v795
    %v867 = vmul.f32 %v707, %v795
    %v868 = vmul.f32 %v708, %v795
    %v869 = vmul.f32 %v709, %v795
    %v870 = vmul.f32 %v710, %v800
    %v871 = vmul.f32 %v711, %v800
    %v872 = vmul.f32 %v712, %v800
    %v873 = vmul.f32 %v713, %v800
    %v874 = vmul.f32 %v714, %v805
    %v875 = vmul.f32 %v715, %v805
    %v876 = vmul.f32 %v716, %v805
    %v877 = vmul.f32 %v717, %v805
    %v878 = vmul.f32 %v718, %v810
    %v879 = vmul.f32 %v719, %v810
    %v880 = vmul.f32 %v720, %v810
    %v881 = vmul.f32 %v721, %v810
    %v882 = vmul.f32 %v722, %v815
    %v883 = vmul.f32 %v723, %v815
    %v884 = vmul.f32 %v724, %v815
    %v885 = vmul.f32 %v725, %v815
    %v886 = vmul.f32 %v726, %v820
    %v887 = vmul.f32 %v727, %v820
    %v888 = vmul.f32 %v728, %v820
    %v889 = vmul.f32 %v729, %v820
    %v890 = vmul.f32 %v730, %v825
    %v891 = vmul.f32 %v731, %v825
    %v892 = vmul.f32 %v732, %v825
    %v893 = vmul.f32 %v733, %v825
    %v894 = vmul.f32 %v734, %v830
    %v895 = vmul.f32 %v735, %v830
    %v896 = vmul.f32 %v736, %v830
    %v897 = vmul.f32 %v737, %v830
    %v898 = vmul.f32 %v738, %v835
    %v899 = vmul.f32 %v739, %v835
    %v900 = vmul.f32 %v740, %v835
    %v901 = vmul.f32 %v741, %v835
    %v902 = vmul.f32 %v742, %v840
    %v903 = vmul.f32 %v743, %v840
    %v904 = vmul.f32 %v744, %v840
    %v905 = vmul.f32 %v745, %v840
    %v906 = vld [vmem:[%s3] sm:$0xf]
    %v908 = vlaneseq
    %v909 = vshrl.u32 %v908, 7
    %v910 = vsub.s32 0, %v909
    %v911 = vrot.slane %v906, %v910
    %v912 = vlaneseq
    %v913 = vshrl.u32 %v912, 7
    %v914 = vsub.s32 1, %v913
    %v915 = vrot.slane %v906, %v914
    %v916 = vlaneseq
    %v917 = vshrl.u32 %v916, 7
    %v918 = vsub.s32 2, %v917
    %v919 = vrot.slane %v906, %v918
    %v920 = vlaneseq
    %v921 = vshrl.u32 %v920, 7
    %v922 = vsub.s32 3, %v921
    %v923 = vrot.slane %v906, %v922
    %v928 = vmul.f32 %v842, %v911
    %v929 = vmul.f32 %v843, %v915
    %v930 = vmul.f32 %v844, %v919
    %v931 = vmul.f32 %v845, %v923
    %v932 = vmul.f32 %v846, %v911
    %v933 = vmul.f32 %v847, %v915
    %v934 = vmul.f32 %v848, %v919
    %v935 = vmul.f32 %v849, %v923
    %v936 = vmul.f32 %v850, %v911
    %v937 = vmul.f32 %v851, %v915
    %v938 = vmul.f32 %v852, %v919
    %v939 = vmul.f32 %v853, %v923
    %v940 = vmul.f32 %v854, %v911
    %v941 = vmul.f32 %v855, %v915
    %v942 = vmul.f32 %v856, %v919
    %v943 = vmul.f32 %v857, %v923
    %v944 = vmul.f32 %v858, %v911
    %v945 = vmul.f32 %v859, %v915
    %v946 = vmul.f32 %v860, %v919
    %v947 = vmul.f32 %v861, %v923
    %v948 = vmul.f32 %v862, %v911
    %v949 = vmul.f32 %v863, %v915
    %v950 = vmul.f32 %v864, %v919
    %v951 = vmul.f32 %v865, %v923
    %v952 = vmul.f32 %v866, %v911
    %v953 = vmul.f32 %v867, %v915
    %v954 = vmul.f32 %v868, %v919
    %v955 = vmul.f32 %v869, %v923
    %v956 = vmul.f32 %v870, %v911
    %v957 = vmul.f32 %v871, %v915
    %v958 = vmul.f32 %v872, %v919
    %v959 = vmul.f32 %v873, %v923
    %v960 = vmul.f32 %v874, %v911
    %v961 = vmul.f32 %v875, %v915
    %v962 = vmul.f32 %v876, %v919
    %v963 = vmul.f32 %v877, %v923
    %v964 = vmul.f32 %v878, %v911
    %v965 = vmul.f32 %v879, %v915
    %v966 = vmul.f32 %v880, %v919
    %v967 = vmul.f32 %v881, %v923
    %v968 = vmul.f32 %v882, %v911
    %v969 = vmul.f32 %v883, %v915
    %v970 = vmul.f32 %v884, %v919
    %v971 = vmul.f32 %v885, %v923
    %v972 = vmul.f32 %v886, %v911
    %v973 = vmul.f32 %v887, %v915
    %v974 = vmul.f32 %v888, %v919
    %v975 = vmul.f32 %v889, %v923
    %v976 = vmul.f32 %v890, %v911
    %v977 = vmul.f32 %v891, %v915
    %v978 = vmul.f32 %v892, %v919
    %v979 = vmul.f32 %v893, %v923
    %v980 = vmul.f32 %v894, %v911
    %v981 = vmul.f32 %v895, %v915
    %v982 = vmul.f32 %v896, %v919
    %v983 = vmul.f32 %v897, %v923
    %v984 = vmul.f32 %v898, %v911
    %v985 = vmul.f32 %v899, %v915
    %v986 = vmul.f32 %v900, %v919
    %v987 = vmul.f32 %v901, %v923
    %v988 = vmul.f32 %v902, %v911
    %v989 = vmul.f32 %v903, %v915
    %v990 = vmul.f32 %v904, %v919
    %v991 = vmul.f32 %v905, %v923
    %992 = vst [vmem:[%s4] sm:$0xff] %v928
    %993 = vst [vmem:[%s4 + $0x8] sm:$0xff] %v929
    %994 = vst [vmem:[%s4 + $0x10] sm:$0xff] %v930
    %995 = vst [vmem:[%s4 + $0x18] sm:$0xff] %v931
    %996 = vst [vmem:[%s4 + $0x20] sm:$0xff] %v932
    %997 = vst [vmem:[%s4 + $0x28] sm:$0xff] %v933
    %998 = vst [vmem:[%s4 + $0x30] sm:$0xff] %v934
    %999 = vst [vmem:[%s4 + $0x38] sm:$0xff] %v935
    %1000 = vst [vmem:[%s4 + $0x40] sm:$0xff] %v936
    %1001 = vst [vmem:[%s4 + $0x48] sm:$0xff] %v937
    %1002 = vst [vmem:[%s4 + $0x50] sm:$0xff] %v938
    %1003 = vst [vmem:[%s4 + $0x58] sm:$0xff] %v939
    %1004 = vst [vmem:[%s4 + $0x60] sm:$0xff] %v940
    %1005 = vst [vmem:[%s4 + $0x68] sm:$0xff] %v941
    %1006 = vst [vmem:[%s4 + $0x70] sm:$0xff] %v942
    %1007 = vst [vmem:[%s4 + $0x78] sm:$0xff] %v943
    %1008 = vst [vmem:[%s4 + $0x80] sm:$0xff] %v944
    %1009 = vst [vmem:[%s4 + $0x88] sm:$0xff] %v945
    %1010 = vst [vmem:[%s4 + $0x90] sm:$0xff] %v946
    %1011 = vst [vmem:[%s4 + $0x98] sm:$0xff] %v947
    %1012 = vst [vmem:[%s4 + $0xa0] sm:$0xff] %v948
    %1013 = vst [vmem:[%s4 + $0xa8] sm:$0xff] %v949
    %1014 = vst [vmem:[%s4 + $0xb0] sm:$0xff] %v950
    %1015 = vst [vmem:[%s4 + $0xb8] sm:$0xff] %v951
    %1016 = vst [vmem:[%s4 + $0xc0] sm:$0xff] %v952
    %1017 = vst [vmem:[%s4 + $0xc8] sm:$0xff] %v953
    %1018 = vst [vmem:[%s4 + $0xd0] sm:$0xff] %v954
    %1019 = vst [vmem:[%s4 + $0xd8] sm:$0xff] %v955
    %1020 = vst [vmem:[%s4 + $0xe0] sm:$0xff] %v956
    %1021 = vst [vmem:[%s4 + $0xe8] sm:$0xff] %v957
    %1022 = vst [vmem:[%s4 + $0xf0] sm:$0xff] %v958
    %1023 = vst [vmem:[%s4 + $0xf8] sm:$0xff] %v959
    %1024 = vst [vmem:[%s4 + $0x100] sm:$0xff] %v960
    %1025 = vst [vmem:[%s4 + $0x108] sm:$0xff] %v961
    %1026 = vst [vmem:[%s4 + $0x110] sm:$0xff] %v962
    %1027 = vst [vmem:[%s4 + $0x118] sm:$0xff] %v963
    %1028 = vst [vmem:[%s4 + $0x120] sm:$0xff] %v964
    %1029 = vst [vmem:[%s4 + $0x128] sm:$0xff] %v965
    %1030 = vst [vmem:[%s4 + $0x130] sm:$0xff] %v966
    %1031 = vst [vmem:[%s4 + $0x138] sm:$0xff] %v967
    %1032 = vst [vmem:[%s4 + $0x140] sm:$0xff] %v968
    %1033 = vst [vmem:[%s4 + $0x148] sm:$0xff] %v969
    %1034 = vst [vmem:[%s4 + $0x150] sm:$0xff] %v970
    %1035 = vst [vmem:[%s4 + $0x158] sm:$0xff] %v971
    %1036 = vst [vmem:[%s4 + $0x160] sm:$0xff] %v972
    %1037 = vst [vmem:[%s4 + $0x168] sm:$0xff] %v973
    %1038 = vst [vmem:[%s4 + $0x170] sm:$0xff] %v974
    %1039 = vst [vmem:[%s4 + $0x178] sm:$0xff] %v975
    %1040 = vst [vmem:[%s4 + $0x180] sm:$0xff] %v976
    %1041 = vst [vmem:[%s4 + $0x188] sm:$0xff] %v977
    %1042 = vst [vmem:[%s4 + $0x190] sm:$0xff] %v978
    %1043 = vst [vmem:[%s4 + $0x198] sm:$0xff] %v979
    %1044 = vst [vmem:[%s4 + $0x1a0] sm:$0xff] %v980
    %1045 = vst [vmem:[%s4 + $0x1a8] sm:$0xff] %v981
    %1046 = vst [vmem:[%s4 + $0x1b0] sm:$0xff] %v982
    %1047 = vst [vmem:[%s4 + $0x1b8] sm:$0xff] %v983
    %1048 = vst [vmem:[%s4 + $0x1c0] sm:$0xff] %v984
    %1049 = vst [vmem:[%s4 + $0x1c8] sm:$0xff] %v985
    %1050 = vst [vmem:[%s4 + $0x1d0] sm:$0xff] %v986
    %1051 = vst [vmem:[%s4 + $0x1d8] sm:$0xff] %v987
    %1052 = vst [vmem:[%s4 + $0x1e0] sm:$0xff] %v988
    %1053 = vst [vmem:[%s4 + $0x1e8] sm:$0xff] %v989
    %1054 = vst [vmem:[%s4 + $0x1f0] sm:$0xff] %v990
    %1055 = vst [vmem:[%s4 + $0x1f8] sm:$0xff] %v991
  $region25: #{arc_margin_product.5} parent=0 // pred_fallthru
    _
  // Predicated region
  $region26: #{arc_margin_product.5} parent=0 // pred_check
    _
  $region27: #{arc_margin_product.5} parent=0 // pred_check_branch
    %1057 = sbr.rel (0) target = $region29
  $region28: #{arc_margin_product.5} parent=0 // pred_region
    _
  $region29: #{arc_margin_product.5} parent=0 // pred_fallthru
    _
  // Predicated region
  $region30: #{arc_margin_product.5} parent=0 // pred_check
    _
  $region31: #{arc_margin_product.5} parent=0 // pred_check_branch
    %1059 = sbr.rel (0) target = $region33
  $region32: #{arc_margin_product.5} parent=0 // pred_region
    _
  $region33: #{arc_margin_product.5} parent=0 // pred_fallthru
    _

</llo_original>
